<compile_context>
chip_gen: v5e
topology: v5e:2x2
jax: 0.10.0
libtpu: 0.0.40
codegen_flags: <defaults>
</compile_context>

<pallas_src>
import math
from dataclasses import dataclass

import jax
import jax.numpy as jnp
from jax.experimental import pallas as pl
from jax.experimental.pallas import tpu as pltpu

LN_EPS = 1e-5  # torch.nn.LayerNorm default


@dataclass
class ConvLayerConfig:
    in_channels: int
    out_channels: int
    kernel_size: int
    num_layers: int
    stride: int


@dataclass(frozen=True)
class LayerSpec:
    """One flattened ConvNormActiv1D block (conv + LayerNorm [+ residual])."""
    c_in: int
    c_out: int
    k: int
    stride: int
    pad: int
    l_in: int
    l_out: int
    residual: bool


def build_layer_specs(configs, l_in):
    """Flatten the Down1D blocks into a static list of conv+LN layer specs."""
    specs = []
    length = l_in
    for cfg in configs:
        pad = (cfg.kernel_size - 1) // 2          # matches the module (odd kernel_size)
        for j in range(cfg.num_layers):
            stride = cfg.stride if j == 0 else 1
            c_in = cfg.in_channels if j == 0 else cfg.out_channels
            residual = j >= 2                     # Down1D: down, layers[0], then residual blocks
            l_out = (length + 2 * pad - cfg.kernel_size) // stride + 1
            specs.append(LayerSpec(c_in=c_in, c_out=cfg.out_channels, k=cfg.kernel_size,
                                   stride=stride, pad=pad, l_in=length, l_out=l_out,
                                   residual=residual))
            length = l_out
    return tuple(specs)


# ------------------------------ param packing ------------------------------- #

def pack_params(params, specs):
    """Pack every layer's (w, b, gamma, beta) into ONE f32 slab (rows, c_max).

    Per-layer block rows: [K*C_in rows of w reshaped (K*C_in, C_out)] + [bias row]
    + [gamma row] + [beta row].  Each block start is 8-row aligned so in-kernel
    loads start sublane-aligned.  Returns (slab, per-layer row offsets).
    """
    c_max = max(s.c_out for s in specs)
    blocks, offsets, off = [], [], 0
    for p, s in zip(params, specs):
        offsets.append(off)
        blk = jnp.concatenate(
            [p["w"].reshape(s.k * s.c_in, s.c_out).astype(jnp.float32),
             p["b"].astype(jnp.float32),
             p["gamma"].astype(jnp.float32),
             p["beta"].astype(jnp.float32)], axis=0)
        rows = blk.shape[0]
        rows_pad = -(-rows // 8) * 8
        blk = jnp.pad(blk, ((0, rows_pad - rows), (0, c_max - s.c_out)))
        blocks.append(blk)
        off += rows_pad
    return jnp.concatenate(blocks, axis=0), tuple(offsets)


# ------------------------------ fused kernel ------------------------------- #

def _halo_intervals(batch, l_pad, pad, l_in):
    """Row intervals of a batch-folded padded buffer that must be zero (the halos),
    merged across adjacent batch segments."""
    ivs = []
    for b in range(batch):
        ivs.append((b * l_pad, pad))                 # top halo of segment b
        ivs.append((b * l_pad + pad + l_in, pad))    # bottom halo of segment b
    merged = []
    for start, size in sorted(ivs):
        if size == 0:
            continue
        if merged and merged[-1][0] + merged[-1][1] == start:
            merged[-1][1] += size
        else:
            merged.append([start, size])
    return [(s, n) for s, n in merged]


def _make_fused_kernel(batch, specs, offsets, pool):
    n_layers = len(specs)

    def kernel(x_ref, p_ref, o_ref, *bufs):
        # bufs[li]: batch-folded padded input buffer of layer li,
        # shape (batch*(l_in + 2*pad), c_in); segment b occupies rows [b*l_pad, (b+1)*l_pad).

        # 1) Zero ONLY the halo rows (interiors are fully overwritten before any read).
        for li, s in enumerate(specs):
            l_pad = s.l_in + 2 * s.pad
            for start, size in _halo_intervals(batch, l_pad, s.pad, s.l_in):
                bufs[li][pl.ds(start, size), :] = jnp.zeros((size, s.c_in), jnp.float32)

        # 2) Stage the raw input into the interiors of layer 0's buffer.
        s0 = specs[0]
        l_pad0 = s0.l_in + 2 * s0.pad
        for b in range(batch):
            bufs[0][pl.ds(b * l_pad0 + s0.pad, s0.l_in), :] = x_ref[b].astype(jnp.float32)

        # 3) Layer stack (all static / unrolled — everything stays in VMEM/vregs).
        for li, s in enumerate(specs):
            buf = bufs[li]
            l_pad = s.l_in + 2 * s.pad
            wc = s.k * s.c_in

            # One slab read per layer; params hoisted out of the tap loop.
            blk = p_ref[pl.ds(offsets[li], wc + 3), :]          # (K*C_in + 3, c_max)
            bias = blk[wc + 0:wc + 1, :s.c_out]                  # (1, C_out)
            gamma = blk[wc + 1:wc + 2, :s.c_out]
            beta = blk[wc + 2:wc + 3, :s.c_out]

            if s.stride == 1:
                # Dense compute over all batch-folded rows; rows straddling a batch
                # boundary are garbage but never used.
                seg = l_pad
                n_rows = batch * l_pad - (s.k - 1)
                taps = [buf[pl.ds(k, n_rows), :] for k in range(s.k)]
            else:
                # Batch-folded strided taps: valid because l_pad % stride == 0, so
                # every batch segment's rows share one arithmetic progression.
                assert l_pad % s.stride == 0, (
                    "stride must divide the padded segment length for batch-folded "
                    "strided taps")  # TODO(synk): per-batch fallback if ever violated.
                seg = l_pad // s.stride
                n_rows = (batch - 1) * seg + s.l_out
                taps = [buf[pl.ds(k, n_rows, s.stride), :] for k in range(s.k)]

            # K independent MXU pushes, reassociated afterwards (no serialized chain).
            parts = [jnp.dot(taps[k], blk[k * s.c_in:(k + 1) * s.c_in, :s.c_out],
                             preferred_element_type=jnp.float32)
                     for k in range(s.k)]
            acc = parts[0]
            for t in parts[1:]:
                acc = acc + t
            acc = acc + bias

            # LayerNorm over channels (biased variance, eps inside rsqrt, affine).
            mean = jnp.mean(acc, axis=-1, keepdims=True)
            cent = acc - mean
            var = jnp.mean(cent * cent, axis=-1, keepdims=True)
            y = cent * jax.lax.rsqrt(var + LN_EPS) * gamma + beta
            # activ is None in this configuration; Dropout1d(p=0) is identity.

            if s.residual:
                # Residual layers are stride-1 / same-channel, so the layer input
                # aligns with the dense output rows shifted by `pad`.
                y = y + buf[pl.ds(s.pad, n_rows), :]

            last = li == n_layers - 1
            if not last:
                nxt = specs[li + 1]
                l_pad_nxt = nxt.l_in + 2 * nxt.pad
                for b in range(batch):
                    bufs[li + 1][pl.ds(b * l_pad_nxt + nxt.pad, s.l_out), :] = \
                        y[b * seg:b * seg + s.l_out, :]
            elif pool:
                # Fused max-over-sequence; single (B, C_out) store.
                pooled = [jnp.max(y[b * seg:b * seg + s.l_out, :], axis=0, keepdims=True)
                          for b in range(batch)]
                o_ref[...] = jnp.concatenate(pooled, axis=0).astype(o_ref.dtype)
            else:
                for b in range(batch):
                    o_ref[b] = y[b * seg:b * seg + s.l_out, :].astype(o_ref.dtype)

    return kernel


def conv1d_model(x, param_slab, offsets, specs, pool=True):
    """x: (B, L, C_in) channels-last.  param_slab/offsets from pack_params()."""
    batch = x.shape[0]
    last = specs[-1]
    if pool:
        out_shape = jax.ShapeDtypeStruct((batch, last.c_out), x.dtype)
    else:
        out_shape = jax.ShapeDtypeStruct((batch, last.l_out, last.c_out), x.dtype)

    # One batch-folded padded f32 activation buffer per layer (a few KB total).
    scratch = [pltpu.VMEM((batch * (s.l_in + 2 * s.pad), s.c_in), jnp.float32)
               for s in specs]

    vmem = pl.BlockSpec(memory_space=pltpu.MemorySpace.VMEM)
    out = pl.pallas_call(
        _make_fused_kernel(batch, specs, offsets, pool),
        out_shape=out_shape,
        in_specs=[vmem, vmem],
        out_specs=vmem,
        scratch_shapes=scratch,
    )(x, param_slab)
    return jnp.squeeze(out)  # mirrors torch `.squeeze()` (no-op at B=2)


# --------------------------- pure-JAX reference ----------------------------- #

def reference_forward(x, params, specs, pool=True):
    """Straightforward jnp implementation (same math as the torch module)."""
    y = x.astype(jnp.float32)
    hp = jax.lax.Precision.HIGHEST
    for p, s in zip(params, specs):
        xp = jnp.pad(y, ((0, 0), (s.pad, s.pad), (0, 0)))
        taps = [xp[:, k:k + (s.l_out - 1) * s.stride + 1:s.stride, :] for k in range(s.k)]
        acc = sum(jnp.einsum("blc,cd->bld", taps[k], p["w"][k], precision=hp)
                  for k in range(s.k)) + p["b"][0]
        mean = acc.mean(-1, keepdims=True)
        cent = acc - mean
        var = (cent * cent).mean(-1, keepdims=True)
        out = cent * jax.lax.rsqrt(var + LN_EPS) * p["gamma"][0] + p["beta"][0]
        if s.residual:
            out = out + y
        y = out
    if pool:
        y = y.max(axis=1)
    return jnp.squeeze(y).astype(x.dtype)


# --------------------------------- params ----------------------------------- #

def init_conv_ln_params(key, spec):
    """Conv1d default init (uniform +/- 1/sqrt(C_in*K)); LayerNorm gamma=1, beta=0."""
    kw, kb = jax.random.split(key)
    bound = 1.0 / math.sqrt(spec.c_in * spec.k)
    return dict(
        w=jax.random.uniform(kw, (spec.k, spec.c_in, spec.c_out), jnp.float32, -bound, bound),
        b=jax.random.uniform(kb, (1, spec.c_out), jnp.float32, -bound, bound),
        gamma=jnp.ones((1, spec.c_out), jnp.float32),
        beta=jnp.zeros((1, spec.c_out), jnp.float32),
    )


# ---------------------------------- main ------------------------------------ #

if __name__ == "__main__":
    configs = [
        ConvLayerConfig(in_channels=4, out_channels=8, kernel_size=3,
                        num_layers=3, stride=2),
        ConvLayerConfig(in_channels=8, out_channels=16, kernel_size=3,
                        num_layers=2, stride=2),
    ]

    B, L, C_in = 2, 16, 4
    specs = build_layer_specs(configs, L)

    key = jax.random.PRNGKey(0)
    kx, kp = jax.random.split(key)
    x = jax.random.normal(kx, (B, L, C_in), jnp.float32)

    params = []
    for s in specs:
        kp, ki = jax.random.split(kp)
        params.append(init_conv_ln_params(ki, s))

    # One-time init: pack all layer params into a single slab (2 input DMAs total).
    param_slab, offsets = pack_params(params, specs)

    out = conv1d_model(x, param_slab, offsets, specs, pool=True)
    out = jax.block_until_ready(out)
    assert out.shape == (B, configs[-1].out_channels), out.shape

    # Numerical check vs. pure-JAX reference (loose tol: MXU f32 accumulation order).
    ref = reference_forward(x, params, specs, pool=True)
    assert jnp.allclose(out, ref, atol=3e-2, rtol=3e-2), float(jnp.abs(out - ref).max())

    print("KERNEL_OK")
</pallas_src>

<mosaic_0001>
module attributes {stable_mosaic.version = 11 : i64} {
  func.func @kernel(%arg0: memref<2x16x4xf32, #tpu.memory_space<vmem>>, %arg1: memref<168x16xf32, #tpu.memory_space<vmem>>, %arg2: memref<2x16xf32, #tpu.memory_space<vmem>>, %arg3: memref<36x4xf32, #tpu.memory_space<vmem>>, %arg4: memref<20x8xf32, #tpu.memory_space<vmem>>, %arg5: memref<20x8xf32, #tpu.memory_space<vmem>>, %arg6: memref<20x8xf32, #tpu.memory_space<vmem>>, %arg7: memref<12x16xf32, #tpu.memory_space<vmem>>) attributes {dimension_semantics = [], scalar_prefetch = 0 : i64, scratch_operands = 5 : i64, tpu.core_type = #tpu.core_type<tc>} {
    %cst = arith.constant 0.000000e+00 : f32
    %0 = vector.broadcast %cst : f32 to vector<1x4xf32>
    %c0 = arith.constant 0 : index
    %c0_0 = arith.constant 0 : index
    %1 = vector.load %arg3[%c0, %c0_0] : memref<36x4xf32, #tpu.memory_space<vmem>>, vector<1x4xf32>
    tpu.vector_store %arg3[%c0, %c0_0], %0 {strides = array<i32>} : memref<36x4xf32, #tpu.memory_space<vmem>>, vector<1x4xf32>,
    %cst_1 = arith.constant 0.000000e+00 : f32
    %2 = vector.broadcast %cst_1 : f32 to vector<2x4xf32>
    %c17 = arith.constant 17 : index
    %c0_2 = arith.constant 0 : index
    %3 = vector.load %arg3[%c17, %c0_2] : memref<36x4xf32, #tpu.memory_space<vmem>>, vector<2x4xf32>
    tpu.vector_store %arg3[%c17, %c0_2], %2 {strides = array<i32>} : memref<36x4xf32, #tpu.memory_space<vmem>>, vector<2x4xf32>,
    %cst_3 = arith.constant 0.000000e+00 : f32
    %4 = vector.broadcast %cst_3 : f32 to vector<1x4xf32>
    %c35 = arith.constant 35 : index
    %c0_4 = arith.constant 0 : index
    %5 = vector.load %arg3[%c35, %c0_4] : memref<36x4xf32, #tpu.memory_space<vmem>>, vector<1x4xf32>
    tpu.vector_store %arg3[%c35, %c0_4], %4 {strides = array<i32>} : memref<36x4xf32, #tpu.memory_space<vmem>>, vector<1x4xf32>,
    %cst_5 = arith.constant 0.000000e+00 : f32
    %6 = vector.broadcast %cst_5 : f32 to vector<1x8xf32>
    %c0_6 = arith.constant 0 : index
    %c0_7 = arith.constant 0 : index
    %7 = vector.load %arg4[%c0_6, %c0_7] : memref<20x8xf32, #tpu.memory_space<vmem>>, vector<1x8xf32>
    tpu.vector_store %arg4[%c0_6, %c0_7], %6 {strides = array<i32>} : memref<20x8xf32, #tpu.memory_space<vmem>>, vector<1x8xf32>,
    %cst_8 = arith.constant 0.000000e+00 : f32
    %8 = vector.broadcast %cst_8 : f32 to vector<2x8xf32>
    %c9 = arith.constant 9 : index
    %c0_9 = arith.constant 0 : index
    %9 = vector.load %arg4[%c9, %c0_9] : memref<20x8xf32, #tpu.memory_space<vmem>>, vector<2x8xf32>
    tpu.vector_store %arg4[%c9, %c0_9], %8 {strides = array<i32>} : memref<20x8xf32, #tpu.memory_space<vmem>>, vector<2x8xf32>,
    %cst_10 = arith.constant 0.000000e+00 : f32
    %10 = vector.broadcast %cst_10 : f32 to vector<1x8xf32>
    %c19 = arith.constant 19 : index
    %c0_11 = arith.constant 0 : index
    %11 = vector.load %arg4[%c19, %c0_11] : memref<20x8xf32, #tpu.memory_space<vmem>>, vector<1x8xf32>
    tpu.vector_store %arg4[%c19, %c0_11], %10 {strides = array<i32>} : memref<20x8xf32, #tpu.memory_space<vmem>>, vector<1x8xf32>,
    %cst_12 = arith.constant 0.000000e+00 : f32
    %12 = vector.broadcast %cst_12 : f32 to vector<1x8xf32>
    %c0_13 = arith.constant 0 : index
    %c0_14 = arith.constant 0 : index
    %13 = vector.load %arg5[%c0_13, %c0_14] : memref<20x8xf32, #tpu.memory_space<vmem>>, vector<1x8xf32>
    tpu.vector_store %arg5[%c0_13, %c0_14], %12 {strides = array<i32>} : memref<20x8xf32, #tpu.memory_space<vmem>>, vector<1x8xf32>,
    %cst_15 = arith.constant 0.000000e+00 : f32
    %14 = vector.broadcast %cst_15 : f32 to vector<2x8xf32>
    %c9_16 = arith.constant 9 : index
    %c0_17 = arith.constant 0 : index
    %15 = vector.load %arg5[%c9_16, %c0_17] : memref<20x8xf32, #tpu.memory_space<vmem>>, vector<2x8xf32>
    tpu.vector_store %arg5[%c9_16, %c0_17], %14 {strides = array<i32>} : memref<20x8xf32, #tpu.memory_space<vmem>>, vector<2x8xf32>,
    %cst_18 = arith.constant 0.000000e+00 : f32
    %16 = vector.broadcast %cst_18 : f32 to vector<1x8xf32>
    %c19_19 = arith.constant 19 : index
    %c0_20 = arith.constant 0 : index
    %17 = vector.load %arg5[%c19_19, %c0_20] : memref<20x8xf32, #tpu.memory_space<vmem>>, vector<1x8xf32>
    tpu.vector_store %arg5[%c19_19, %c0_20], %16 {strides = array<i32>} : memref<20x8xf32, #tpu.memory_space<vmem>>, vector<1x8xf32>,
    %cst_21 = arith.constant 0.000000e+00 : f32
    %18 = vector.broadcast %cst_21 : f32 to vector<1x8xf32>
    %c0_22 = arith.constant 0 : index
    %c0_23 = arith.constant 0 : index
    %19 = vector.load %arg6[%c0_22, %c0_23] : memref<20x8xf32, #tpu.memory_space<vmem>>, vector<1x8xf32>
    tpu.vector_store %arg6[%c0_22, %c0_23], %18 {strides = array<i32>} : memref<20x8xf32, #tpu.memory_space<vmem>>, vector<1x8xf32>,
    %cst_24 = arith.constant 0.000000e+00 : f32
    %20 = vector.broadcast %cst_24 : f32 to vector<2x8xf32>
    %c9_25 = arith.constant 9 : index
    %c0_26 = arith.constant 0 : index
    %21 = vector.load %arg6[%c9_25, %c0_26] : memref<20x8xf32, #tpu.memory_space<vmem>>, vector<2x8xf32>
    tpu.vector_store %arg6[%c9_25, %c0_26], %20 {strides = array<i32>} : memref<20x8xf32, #tpu.memory_space<vmem>>, vector<2x8xf32>,
    %cst_27 = arith.constant 0.000000e+00 : f32
    %22 = vector.broadcast %cst_27 : f32 to vector<1x8xf32>
    %c19_28 = arith.constant 19 : index
    %c0_29 = arith.constant 0 : index
    %23 = vector.load %arg6[%c19_28, %c0_29] : memref<20x8xf32, #tpu.memory_space<vmem>>, vector<1x8xf32>
    tpu.vector_store %arg6[%c19_28, %c0_29], %22 {strides = array<i32>} : memref<20x8xf32, #tpu.memory_space<vmem>>, vector<1x8xf32>,
    %cst_30 = arith.constant 0.000000e+00 : f32
    %24 = vector.broadcast %cst_30 : f32 to vector<1x16xf32>
    %c0_31 = arith.constant 0 : index
    %c0_32 = arith.constant 0 : index
    %25 = vector.load %arg7[%c0_31, %c0_32] : memref<12x16xf32, #tpu.memory_space<vmem>>, vector<1x16xf32>
    tpu.vector_store %arg7[%c0_31, %c0_32], %24 {strides = array<i32>} : memref<12x16xf32, #tpu.memory_space<vmem>>, vector<1x16xf32>,
    %cst_33 = arith.constant 0.000000e+00 : f32
    %26 = vector.broadcast %cst_33 : f32 to vector<2x16xf32>
    %c5 = arith.constant 5 : index
    %c0_34 = arith.constant 0 : index
    %27 = vector.load %arg7[%c5, %c0_34] : memref<12x16xf32, #tpu.memory_space<vmem>>, vector<2x16xf32>
    tpu.vector_store %arg7[%c5, %c0_34], %26 {strides = array<i32>} : memref<12x16xf32, #tpu.memory_space<vmem>>, vector<2x16xf32>,
    %cst_35 = arith.constant 0.000000e+00 : f32
    %28 = vector.broadcast %cst_35 : f32 to vector<1x16xf32>
    %c11 = arith.constant 11 : index
    %c0_36 = arith.constant 0 : index
    %29 = vector.load %arg7[%c11, %c0_36] : memref<12x16xf32, #tpu.memory_space<vmem>>, vector<1x16xf32>
    tpu.vector_store %arg7[%c11, %c0_36], %28 {strides = array<i32>} : memref<12x16xf32, #tpu.memory_space<vmem>>, vector<1x16xf32>,
    %c0_37 = arith.constant 0 : index
    %c0_38 = arith.constant 0 : index
    %c0_39 = arith.constant 0 : index
    %30 = vector.load %arg0[%c0_37, %c0_38, %c0_39] : memref<2x16x4xf32, #tpu.memory_space<vmem>>, vector<1x16x4xf32>
    %31 = vector.shape_cast %30 : vector<1x16x4xf32> to vector<16x4xf32>
    %c1 = arith.constant 1 : index
    %c0_40 = arith.constant 0 : index
    %32 = vector.load %arg3[%c1, %c0_40] : memref<36x4xf32, #tpu.memory_space<vmem>>, vector<16x4xf32>
    tpu.vector_store %arg3[%c1, %c0_40], %31 {strides = array<i32>} : memref<36x4xf32, #tpu.memory_space<vmem>>, vector<16x4xf32>,
    %c1_41 = arith.constant 1 : index
    %c0_42 = arith.constant 0 : index
    %c0_43 = arith.constant 0 : index
    %33 = vector.load %arg0[%c1_41, %c0_42, %c0_43] : memref<2x16x4xf32, #tpu.memory_space<vmem>>, vector<1x16x4xf32>
    %34 = vector.shape_cast %33 : vector<1x16x4xf32> to vector<16x4xf32>
    %c19_44 = arith.constant 19 : index
    %c0_45 = arith.constant 0 : index
    %35 = vector.load %arg3[%c19_44, %c0_45] : memref<36x4xf32, #tpu.memory_space<vmem>>, vector<16x4xf32>
    tpu.vector_store %arg3[%c19_44, %c0_45], %34 {strides = array<i32>} : memref<36x4xf32, #tpu.memory_space<vmem>>, vector<16x4xf32>,
    %c0_46 = arith.constant 0 : index
    %c0_47 = arith.constant 0 : index
    %36 = vector.load %arg1[%c0_46, %c0_47] : memref<168x16xf32, #tpu.memory_space<vmem>>, vector<15x16xf32>
    %37 = vector.extract_strided_slice %36 {offsets = [12, 0], sizes = [1, 8], strides = [1, 1]} : vector<15x16xf32> to vector<1x8xf32>
    %38 = vector.extract_strided_slice %36 {offsets = [13, 0], sizes = [1, 8], strides = [1, 1]} : vector<15x16xf32> to vector<1x8xf32>
    %39 = vector.extract_strided_slice %36 {offsets = [14, 0], sizes = [1, 8], strides = [1, 1]} : vector<15x16xf32> to vector<1x8xf32>
    %c0_48 = arith.constant 0 : index
    %c0_49 = arith.constant 0 : index
    %40 = tpu.strided_load %arg3[%c0_48, %c0_49] {strides = array<i32: 2, 1>} : memref<36x4xf32, #tpu.memory_space<vmem>>, vector<17x4xf32>
    %c1_50 = arith.constant 1 : index
    %c0_51 = arith.constant 0 : index
    %41 = tpu.strided_load %arg3[%c1_50, %c0_51] {strides = array<i32: 2, 1>} : memref<36x4xf32, #tpu.memory_space<vmem>>, vector<17x4xf32>
    %c2 = arith.constant 2 : index
    %c0_52 = arith.constant 0 : index
    %42 = tpu.strided_load %arg3[%c2, %c0_52] {strides = array<i32: 2, 1>} : memref<36x4xf32, #tpu.memory_space<vmem>>, vector<17x4xf32>
    %43 = vector.extract_strided_slice %36 {offsets = [0, 0], sizes = [4, 8], strides = [1, 1]} : vector<15x16xf32> to vector<4x8xf32>
    %cst_53 = arith.constant dense<0.000000e+00> : vector<17x8xf32>
    %44 = tpu.matmul %40, %43, %cst_53 {dimension_numbers = #tpu.dot_dimension_numbers<[1], [0], [0], [1], [0, 0, 1, 1], [], []>} : vector<17x4xf32>, vector<4x8xf32>, vector<17x8xf32> -> vector<17x8xf32>
    %45 = vector.extract_strided_slice %36 {offsets = [4, 0], sizes = [4, 8], strides = [1, 1]} : vector<15x16xf32> to vector<4x8xf32>
    %cst_54 = arith.constant dense<0.000000e+00> : vector<17x8xf32>
    %46 = tpu.matmul %41, %45, %cst_54 {dimension_numbers = #tpu.dot_dimension_numbers<[1], [0], [0], [1], [0, 0, 1, 1], [], []>} : vector<17x4xf32>, vector<4x8xf32>, vector<17x8xf32> -> vector<17x8xf32>
    %47 = vector.extract_strided_slice %36 {offsets = [8, 0], sizes = [4, 8], strides = [1, 1]} : vector<15x16xf32> to vector<4x8xf32>
    %cst_55 = arith.constant dense<0.000000e+00> : vector<17x8xf32>
    %48 = tpu.matmul %42, %47, %cst_55 {dimension_numbers = #tpu.dot_dimension_numbers<[1], [0], [0], [1], [0, 0, 1, 1], [], []>} : vector<17x4xf32>, vector<4x8xf32>, vector<17x8xf32> -> vector<17x8xf32>
    %49 = arith.addf %44, %46 : vector<17x8xf32>
    %50 = arith.addf %49, %48 : vector<17x8xf32>
    %51 = vector.broadcast %37 : vector<1x8xf32> to vector<17x8xf32>
    %52 = arith.addf %50, %51 : vector<17x8xf32>
    %cst_56 = arith.constant dense<0.000000e+00> : vector<17xf32>
    %53 = vector.multi_reduction <add>, %52, %cst_56 [1] : vector<17x8xf32> to vector<17xf32>
    %54 = vector.shape_cast %53 : vector<17xf32> to vector<17x1xf32>
    %cst_57 = arith.constant 8.000000e+00 : f32
    %55 = vector.broadcast %cst_57 : f32 to vector<17x1xf32>
    %56 = arith.divf %54, %55 : vector<17x1xf32>
    %57 = vector.broadcast %56 : vector<17x1xf32> to vector<17x8xf32>
    %58 = arith.subf %52, %57 : vector<17x8xf32>
    %59 = arith.mulf %58, %58 : vector<17x8xf32>
    %cst_58 = arith.constant dense<0.000000e+00> : vector<17xf32>
    %60 = vector.multi_reduction <add>, %59, %cst_58 [1] : vector<17x8xf32> to vector<17xf32>
    %61 = vector.shape_cast %60 : vector<17xf32> to vector<17x1xf32>
    %cst_59 = arith.constant 8.000000e+00 : f32
    %62 = vector.broadcast %cst_59 : f32 to vector<17x1xf32>
    %63 = arith.divf %61, %62 : vector<17x1xf32>
    %cst_60 = arith.constant 9.99999974E-6 : f32
    %64 = vector.broadcast %cst_60 : f32 to vector<17x1xf32>
    %65 = arith.addf %63, %64 : vector<17x1xf32>
    %66 = math.rsqrt %65 : vector<17x1xf32>
    %67 = vector.broadcast %66 : vector<17x1xf32> to vector<17x8xf32>
    %68 = arith.mulf %58, %67 : vector<17x8xf32>
    %69 = vector.broadcast %38 : vector<1x8xf32> to vector<17x8xf32>
    %70 = arith.mulf %68, %69 : vector<17x8xf32>
    %71 = vector.broadcast %39 : vector<1x8xf32> to vector<17x8xf32>
    %72 = arith.addf %70, %71 : vector<17x8xf32>
    %73 = vector.extract_strided_slice %72 {offsets = [0, 0], sizes = [8, 8], strides = [1, 1]} : vector<17x8xf32> to vector<8x8xf32>
    %c1_61 = arith.constant 1 : index
    %c0_62 = arith.constant 0 : index
    %74 = vector.load %arg4[%c1_61, %c0_62] : memref<20x8xf32, #tpu.memory_space<vmem>>, vector<8x8xf32>
    tpu.vector_store %arg4[%c1_61, %c0_62], %73 {strides = array<i32>} : memref<20x8xf32, #tpu.memory_space<vmem>>, vector<8x8xf32>,
    %75 = vector.extract_strided_slice %72 {offsets = [9, 0], sizes = [8, 8], strides = [1, 1]} : vector<17x8xf32> to vector<8x8xf32>
    %c11_63 = arith.constant 11 : index
    %c0_64 = arith.constant 0 : index
    %76 = vector.load %arg4[%c11_63, %c0_64] : memref<20x8xf32, #tpu.memory_space<vmem>>, vector<8x8xf32>
    tpu.vector_store %arg4[%c11_63, %c0_64], %75 {strides = array<i32>} : memref<20x8xf32, #tpu.memory_space<vmem>>, vector<8x8xf32>,
    %c16 = arith.constant 16 : index
    %c0_65 = arith.constant 0 : index
    %77 = vector.load %arg1[%c16, %c0_65] : memref<168x16xf32, #tpu.memory_space<vmem>>, vector<27x16xf32>
    %78 = vector.extract_strided_slice %77 {offsets = [24, 0], sizes = [1, 8], strides = [1, 1]} : vector<27x16xf32> to vector<1x8xf32>
    %79 = vector.extract_strided_slice %77 {offsets = [25, 0], sizes = [1, 8], strides = [1, 1]} : vector<27x16xf32> to vector<1x8xf32>
    %80 = vector.extract_strided_slice %77 {offsets = [26, 0], sizes = [1, 8], strides = [1, 1]} : vector<27x16xf32> to vector<1x8xf32>
    %c0_66 = arith.constant 0 : index
    %c0_67 = arith.constant 0 : index
    %81 = vector.load %arg4[%c0_66, %c0_67] : memref<20x8xf32, #tpu.memory_space<vmem>>, vector<18x8xf32>
    %c1_68 = arith.constant 1 : index
    %c0_69 = arith.constant 0 : index
    %82 = vector.load %arg4[%c1_68, %c0_69] : memref<20x8xf32, #tpu.memory_space<vmem>>, vector<18x8xf32>
    %c2_70 = arith.constant 2 : index
    %c0_71 = arith.constant 0 : index
    %83 = vector.load %arg4[%c2_70, %c0_71] : memref<20x8xf32, #tpu.memory_space<vmem>>, vector<18x8xf32>
    %84 = vector.extract_strided_slice %77 {offsets = [0, 0], sizes = [8, 8], strides = [1, 1]} : vector<27x16xf32> to vector<8x8xf32>
    %cst_72 = arith.constant dense<0.000000e+00> : vector<18x8xf32>
    %85 = tpu.matmul %81, %84, %cst_72 {dimension_numbers = #tpu.dot_dimension_numbers<[1], [0], [0], [1], [0, 0, 1, 1], [], []>} : vector<18x8xf32>, vector<8x8xf32>, vector<18x8xf32> -> vector<18x8xf32>
    %86 = vector.extract_strided_slice %77 {offsets = [8, 0], sizes = [8, 8], strides = [1, 1]} : vector<27x16xf32> to vector<8x8xf32>
    %cst_73 = arith.constant dense<0.000000e+00> : vector<18x8xf32>
    %87 = tpu.matmul %82, %86, %cst_73 {dimension_numbers = #tpu.dot_dimension_numbers<[1], [0], [0], [1], [0, 0, 1, 1], [], []>} : vector<18x8xf32>, vector<8x8xf32>, vector<18x8xf32> -> vector<18x8xf32>
    %88 = vector.extract_strided_slice %77 {offsets = [16, 0], sizes = [8, 8], strides = [1, 1]} : vector<27x16xf32> to vector<8x8xf32>
    %cst_74 = arith.constant dense<0.000000e+00> : vector<18x8xf32>
    %89 = tpu.matmul %83, %88, %cst_74 {dimension_numbers = #tpu.dot_dimension_numbers<[1], [0], [0], [1], [0, 0, 1, 1], [], []>} : vector<18x8xf32>, vector<8x8xf32>, vector<18x8xf32> -> vector<18x8xf32>
    %90 = arith.addf %85, %87 : vector<18x8xf32>
    %91 = arith.addf %90, %89 : vector<18x8xf32>
    %92 = vector.broadcast %78 : vector<1x8xf32> to vector<18x8xf32>
    %93 = arith.addf %91, %92 : vector<18x8xf32>
    %cst_75 = arith.constant dense<0.000000e+00> : vector<18xf32>
    %94 = vector.multi_reduction <add>, %93, %cst_75 [1] : vector<18x8xf32> to vector<18xf32>
    %95 = vector.shape_cast %94 : vector<18xf32> to vector<18x1xf32>
    %cst_76 = arith.constant 8.000000e+00 : f32
    %96 = vector.broadcast %cst_76 : f32 to vector<18x1xf32>
    %97 = arith.divf %95, %96 : vector<18x1xf32>
    %98 = vector.broadcast %97 : vector<18x1xf32> to vector<18x8xf32>
    %99 = arith.subf %93, %98 : vector<18x8xf32>
    %100 = arith.mulf %99, %99 : vector<18x8xf32>
    %cst_77 = arith.constant dense<0.000000e+00> : vector<18xf32>
    %101 = vector.multi_reduction <add>, %100, %cst_77 [1] : vector<18x8xf32> to vector<18xf32>
    %102 = vector.shape_cast %101 : vector<18xf32> to vector<18x1xf32>
    %cst_78 = arith.constant 8.000000e+00 : f32
    %103 = vector.broadcast %cst_78 : f32 to vector<18x1xf32>
    %104 = arith.divf %102, %103 : vector<18x1xf32>
    %cst_79 = arith.constant 9.99999974E-6 : f32
    %105 = vector.broadcast %cst_79 : f32 to vector<18x1xf32>
    %106 = arith.addf %104, %105 : vector<18x1xf32>
    %107 = math.rsqrt %106 : vector<18x1xf32>
    %108 = vector.broadcast %107 : vector<18x1xf32> to vector<18x8xf32>
    %109 = arith.mulf %99, %108 : vector<18x8xf32>
    %110 = vector.broadcast %79 : vector<1x8xf32> to vector<18x8xf32>
    %111 = arith.mulf %109, %110 : vector<18x8xf32>
    %112 = vector.broadcast %80 : vector<1x8xf32> to vector<18x8xf32>
    %113 = arith.addf %111, %112 : vector<18x8xf32>
    %114 = vector.extract_strided_slice %113 {offsets = [0, 0], sizes = [8, 8], strides = [1, 1]} : vector<18x8xf32> to vector<8x8xf32>
    %c1_80 = arith.constant 1 : index
    %c0_81 = arith.constant 0 : index
    %115 = vector.load %arg5[%c1_80, %c0_81] : memref<20x8xf32, #tpu.memory_space<vmem>>, vector<8x8xf32>
    tpu.vector_store %arg5[%c1_80, %c0_81], %114 {strides = array<i32>} : memref<20x8xf32, #tpu.memory_space<vmem>>, vector<8x8xf32>,
    %116 = vector.extract_strided_slice %113 {offsets = [10, 0], sizes = [8, 8], strides = [1, 1]} : vector<18x8xf32> to vector<8x8xf32>
    %c11_82 = arith.constant 11 : index
    %c0_83 = arith.constant 0 : index
    %117 = vector.load %arg5[%c11_82, %c0_83] : memref<20x8xf32, #tpu.memory_space<vmem>>, vector<8x8xf32>
    tpu.vector_store %arg5[%c11_82, %c0_83], %116 {strides = array<i32>} : memref<20x8xf32, #tpu.memory_space<vmem>>, vector<8x8xf32>,
    %c48 = arith.constant 48 : index
    %c0_84 = arith.constant 0 : index
    %118 = vector.load %arg1[%c48, %c0_84] : memref<168x16xf32, #tpu.memory_space<vmem>>, vector<27x16xf32>
    %119 = vector.extract_strided_slice %118 {offsets = [24, 0], sizes = [1, 8], strides = [1, 1]} : vector<27x16xf32> to vector<1x8xf32>
    %120 = vector.extract_strided_slice %118 {offsets = [25, 0], sizes = [1, 8], strides = [1, 1]} : vector<27x16xf32> to vector<1x8xf32>
    %121 = vector.extract_strided_slice %118 {offsets = [26, 0], sizes = [1, 8], strides = [1, 1]} : vector<27x16xf32> to vector<1x8xf32>
    %c0_85 = arith.constant 0 : index
    %c0_86 = arith.constant 0 : index
    %122 = vector.load %arg5[%c0_85, %c0_86] : memref<20x8xf32, #tpu.memory_space<vmem>>, vector<18x8xf32>
    %c1_87 = arith.constant 1 : index
    %c0_88 = arith.constant 0 : index
    %123 = vector.load %arg5[%c1_87, %c0_88] : memref<20x8xf32, #tpu.memory_space<vmem>>, vector<18x8xf32>
    %c2_89 = arith.constant 2 : index
    %c0_90 = arith.constant 0 : index
    %124 = vector.load %arg5[%c2_89, %c0_90] : memref<20x8xf32, #tpu.memory_space<vmem>>, vector<18x8xf32>
    %125 = vector.extract_strided_slice %118 {offsets = [0, 0], sizes = [8, 8], strides = [1, 1]} : vector<27x16xf32> to vector<8x8xf32>
    %cst_91 = arith.constant dense<0.000000e+00> : vector<18x8xf32>
    %126 = tpu.matmul %122, %125, %cst_91 {dimension_numbers = #tpu.dot_dimension_numbers<[1], [0], [0], [1], [0, 0, 1, 1], [], []>} : vector<18x8xf32>, vector<8x8xf32>, vector<18x8xf32> -> vector<18x8xf32>
    %127 = vector.extract_strided_slice %118 {offsets = [8, 0], sizes = [8, 8], strides = [1, 1]} : vector<27x16xf32> to vector<8x8xf32>
    %cst_92 = arith.constant dense<0.000000e+00> : vector<18x8xf32>
    %128 = tpu.matmul %123, %127, %cst_92 {dimension_numbers = #tpu.dot_dimension_numbers<[1], [0], [0], [1], [0, 0, 1, 1], [], []>} : vector<18x8xf32>, vector<8x8xf32>, vector<18x8xf32> -> vector<18x8xf32>
    %129 = vector.extract_strided_slice %118 {offsets = [16, 0], sizes = [8, 8], strides = [1, 1]} : vector<27x16xf32> to vector<8x8xf32>
    %cst_93 = arith.constant dense<0.000000e+00> : vector<18x8xf32>
    %130 = tpu.matmul %124, %129, %cst_93 {dimension_numbers = #tpu.dot_dimension_numbers<[1], [0], [0], [1], [0, 0, 1, 1], [], []>} : vector<18x8xf32>, vector<8x8xf32>, vector<18x8xf32> -> vector<18x8xf32>
    %131 = arith.addf %126, %128 : vector<18x8xf32>
    %132 = arith.addf %131, %130 : vector<18x8xf32>
    %133 = vector.broadcast %119 : vector<1x8xf32> to vector<18x8xf32>
    %134 = arith.addf %132, %133 : vector<18x8xf32>
    %cst_94 = arith.constant dense<0.000000e+00> : vector<18xf32>
    %135 = vector.multi_reduction <add>, %134, %cst_94 [1] : vector<18x8xf32> to vector<18xf32>
    %136 = vector.shape_cast %135 : vector<18xf32> to vector<18x1xf32>
    %cst_95 = arith.constant 8.000000e+00 : f32
    %137 = vector.broadcast %cst_95 : f32 to vector<18x1xf32>
    %138 = arith.divf %136, %137 : vector<18x1xf32>
    %139 = vector.broadcast %138 : vector<18x1xf32> to vector<18x8xf32>
    %140 = arith.subf %134, %139 : vector<18x8xf32>
    %141 = arith.mulf %140, %140 : vector<18x8xf32>
    %cst_96 = arith.constant dense<0.000000e+00> : vector<18xf32>
    %142 = vector.multi_reduction <add>, %141, %cst_96 [1] : vector<18x8xf32> to vector<18xf32>
    %143 = vector.shape_cast %142 : vector<18xf32> to vector<18x1xf32>
    %cst_97 = arith.constant 8.000000e+00 : f32
    %144 = vector.broadcast %cst_97 : f32 to vector<18x1xf32>
    %145 = arith.divf %143, %144 : vector<18x1xf32>
    %cst_98 = arith.constant 9.99999974E-6 : f32
    %146 = vector.broadcast %cst_98 : f32 to vector<18x1xf32>
    %147 = arith.addf %145, %146 : vector<18x1xf32>
    %148 = math.rsqrt %147 : vector<18x1xf32>
    %149 = vector.broadcast %148 : vector<18x1xf32> to vector<18x8xf32>
    %150 = arith.mulf %140, %149 : vector<18x8xf32>
    %151 = vector.broadcast %120 : vector<1x8xf32> to vector<18x8xf32>
    %152 = arith.mulf %150, %151 : vector<18x8xf32>
    %153 = vector.broadcast %121 : vector<1x8xf32> to vector<18x8xf32>
    %154 = arith.addf %152, %153 : vector<18x8xf32>
    %c1_99 = arith.constant 1 : index
    %c0_100 = arith.constant 0 : index
    %155 = vector.load %arg5[%c1_99, %c0_100] : memref<20x8xf32, #tpu.memory_space<vmem>>, vector<18x8xf32>
    %156 = arith.addf %154, %155 : vector<18x8xf32>
    %157 = vector.extract_strided_slice %156 {offsets = [0, 0], sizes = [8, 8], strides = [1, 1]} : vector<18x8xf32> to vector<8x8xf32>
    %c1_101 = arith.constant 1 : index
    %c0_102 = arith.constant 0 : index
    %158 = vector.load %arg6[%c1_101, %c0_102] : memref<20x8xf32, #tpu.memory_space<vmem>>, vector<8x8xf32>
    tpu.vector_store %arg6[%c1_101, %c0_102], %157 {strides = array<i32>} : memref<20x8xf32, #tpu.memory_space<vmem>>, vector<8x8xf32>,
    %159 = vector.extract_strided_slice %156 {offsets = [10, 0], sizes = [8, 8], strides = [1, 1]} : vector<18x8xf32> to vector<8x8xf32>
    %c11_103 = arith.constant 11 : index
    %c0_104 = arith.constant 0 : index
    %160 = vector.load %arg6[%c11_103, %c0_104] : memref<20x8xf32, #tpu.memory_space<vmem>>, vector<8x8xf32>
    tpu.vector_store %arg6[%c11_103, %c0_104], %159 {strides = array<i32>} : memref<20x8xf32, #tpu.memory_space<vmem>>, vector<8x8xf32>,
    %c80 = arith.constant 80 : index
    %c0_105 = arith.constant 0 : index
    %161 = vector.load %arg1[%c80, %c0_105] : memref<168x16xf32, #tpu.memory_space<vmem>>, vector<27x16xf32>
    %162 = vector.extract_strided_slice %161 {offsets = [24, 0], sizes = [1, 16], strides = [1, 1]} : vector<27x16xf32> to vector<1x16xf32>
    %163 = vector.extract_strided_slice %161 {offsets = [25, 0], sizes = [1, 16], strides = [1, 1]} : vector<27x16xf32> to vector<1x16xf32>
    %164 = vector.extract_strided_slice %161 {offsets = [26, 0], sizes = [1, 16], strides = [1, 1]} : vector<27x16xf32> to vector<1x16xf32>
    %c0_106 = arith.constant 0 : index
    %c0_107 = arith.constant 0 : index
    %165 = tpu.strided_load %arg6[%c0_106, %c0_107] {strides = array<i32: 2, 1>} : memref<20x8xf32, #tpu.memory_space<vmem>>, vector<9x8xf32>
    %c1_108 = arith.constant 1 : index
    %c0_109 = arith.constant 0 : index
    %166 = tpu.strided_load %arg6[%c1_108, %c0_109] {strides = array<i32: 2, 1>} : memref<20x8xf32, #tpu.memory_space<vmem>>, vector<9x8xf32>
    %c2_110 = arith.constant 2 : index
    %c0_111 = arith.constant 0 : index
    %167 = tpu.strided_load %arg6[%c2_110, %c0_111] {strides = array<i32: 2, 1>} : memref<20x8xf32, #tpu.memory_space<vmem>>, vector<9x8xf32>
    %168 = vector.extract_strided_slice %161 {offsets = [0, 0], sizes = [8, 16], strides = [1, 1]} : vector<27x16xf32> to vector<8x16xf32>
    %cst_112 = arith.constant dense<0.000000e+00> : vector<9x16xf32>
    %169 = tpu.matmul %165, %168, %cst_112 {dimension_numbers = #tpu.dot_dimension_numbers<[1], [0], [0], [1], [0, 0, 1, 1], [], []>} : vector<9x8xf32>, vector<8x16xf32>, vector<9x16xf32> -> vector<9x16xf32>
    %170 = vector.extract_strided_slice %161 {offsets = [8, 0], sizes = [8, 16], strides = [1, 1]} : vector<27x16xf32> to vector<8x16xf32>
    %cst_113 = arith.constant dense<0.000000e+00> : vector<9x16xf32>
    %171 = tpu.matmul %166, %170, %cst_113 {dimension_numbers = #tpu.dot_dimension_numbers<[1], [0], [0], [1], [0, 0, 1, 1], [], []>} : vector<9x8xf32>, vector<8x16xf32>, vector<9x16xf32> -> vector<9x16xf32>
    %172 = vector.extract_strided_slice %161 {offsets = [16, 0], sizes = [8, 16], strides = [1, 1]} : vector<27x16xf32> to vector<8x16xf32>
    %cst_114 = arith.constant dense<0.000000e+00> : vector<9x16xf32>
    %173 = tpu.matmul %167, %172, %cst_114 {dimension_numbers = #tpu.dot_dimension_numbers<[1], [0], [0], [1], [0, 0, 1, 1], [], []>} : vector<9x8xf32>, vector<8x16xf32>, vector<9x16xf32> -> vector<9x16xf32>
    %174 = arith.addf %169, %171 : vector<9x16xf32>
    %175 = arith.addf %174, %173 : vector<9x16xf32>
    %176 = vector.broadcast %162 : vector<1x16xf32> to vector<9x16xf32>
    %177 = arith.addf %175, %176 : vector<9x16xf32>
    %cst_115 = arith.constant dense<0.000000e+00> : vector<9xf32>
    %178 = vector.multi_reduction <add>, %177, %cst_115 [1] : vector<9x16xf32> to vector<9xf32>
    %179 = vector.shape_cast %178 : vector<9xf32> to vector<9x1xf32>
    %cst_116 = arith.constant 1.600000e+01 : f32
    %180 = vector.broadcast %cst_116 : f32 to vector<9x1xf32>
    %181 = arith.divf %179, %180 : vector<9x1xf32>
    %182 = vector.broadcast %181 : vector<9x1xf32> to vector<9x16xf32>
    %183 = arith.subf %177, %182 : vector<9x16xf32>
    %184 = arith.mulf %183, %183 : vector<9x16xf32>
    %cst_117 = arith.constant dense<0.000000e+00> : vector<9xf32>
    %185 = vector.multi_reduction <add>, %184, %cst_117 [1] : vector<9x16xf32> to vector<9xf32>
    %186 = vector.shape_cast %185 : vector<9xf32> to vector<9x1xf32>
    %cst_118 = arith.constant 1.600000e+01 : f32
    %187 = vector.broadcast %cst_118 : f32 to vector<9x1xf32>
    %188 = arith.divf %186, %187 : vector<9x1xf32>
    %cst_119 = arith.constant 9.99999974E-6 : f32
    %189 = vector.broadcast %cst_119 : f32 to vector<9x1xf32>
    %190 = arith.addf %188, %189 : vector<9x1xf32>
    %191 = math.rsqrt %190 : vector<9x1xf32>
    %192 = vector.broadcast %191 : vector<9x1xf32> to vector<9x16xf32>
    %193 = arith.mulf %183, %192 : vector<9x16xf32>
    %194 = vector.broadcast %163 : vector<1x16xf32> to vector<9x16xf32>
    %195 = arith.mulf %193, %194 : vector<9x16xf32>
    %196 = vector.broadcast %164 : vector<1x16xf32> to vector<9x16xf32>
    %197 = arith.addf %195, %196 : vector<9x16xf32>
    %198 = vector.extract_strided_slice %197 {offsets = [0, 0], sizes = [4, 16], strides = [1, 1]} : vector<9x16xf32> to vector<4x16xf32>
    %c1_120 = arith.constant 1 : index
    %c0_121 = arith.constant 0 : index
    %199 = vector.load %arg7[%c1_120, %c0_121] : memref<12x16xf32, #tpu.memory_space<vmem>>, vector<4x16xf32>
    tpu.vector_store %arg7[%c1_120, %c0_121], %198 {strides = array<i32>} : memref<12x16xf32, #tpu.memory_space<vmem>>, vector<4x16xf32>,
    %200 = vector.extract_strided_slice %197 {offsets = [5, 0], sizes = [4, 16], strides = [1, 1]} : vector<9x16xf32> to vector<4x16xf32>
    %c7 = arith.constant 7 : index
    %c0_122 = arith.constant 0 : index
    %201 = vector.load %arg7[%c7, %c0_122] : memref<12x16xf32, #tpu.memory_space<vmem>>, vector<4x16xf32>
    tpu.vector_store %arg7[%c7, %c0_122], %200 {strides = array<i32>} : memref<12x16xf32, #tpu.memory_space<vmem>>, vector<4x16xf32>,
    %c112 = arith.constant 112 : index
    %c0_123 = arith.constant 0 : index
    %202 = vector.load %arg1[%c112, %c0_123] : memref<168x16xf32, #tpu.memory_space<vmem>>, vector<51x16xf32>
    %203 = vector.extract_strided_slice %202 {offsets = [48, 0], sizes = [1, 16], strides = [1, 1]} : vector<51x16xf32> to vector<1x16xf32>
    %204 = vector.extract_strided_slice %202 {offsets = [49, 0], sizes = [1, 16], strides = [1, 1]} : vector<51x16xf32> to vector<1x16xf32>
    %205 = vector.extract_strided_slice %202 {offsets = [50, 0], sizes = [1, 16], strides = [1, 1]} : vector<51x16xf32> to vector<1x16xf32>
    %c0_124 = arith.constant 0 : index
    %c0_125 = arith.constant 0 : index
    %206 = vector.load %arg7[%c0_124, %c0_125] : memref<12x16xf32, #tpu.memory_space<vmem>>, vector<10x16xf32>
    %c1_126 = arith.constant 1 : index
    %c0_127 = arith.constant 0 : index
    %207 = vector.load %arg7[%c1_126, %c0_127] : memref<12x16xf32, #tpu.memory_space<vmem>>, vector<10x16xf32>
    %c2_128 = arith.constant 2 : index
    %c0_129 = arith.constant 0 : index
    %208 = vector.load %arg7[%c2_128, %c0_129] : memref<12x16xf32, #tpu.memory_space<vmem>>, vector<10x16xf32>
    %209 = vector.extract_strided_slice %202 {offsets = [0, 0], sizes = [16, 16], strides = [1, 1]} : vector<51x16xf32> to vector<16x16xf32>
    %cst_130 = arith.constant dense<0.000000e+00> : vector<10x16xf32>
    %210 = tpu.matmul %206, %209, %cst_130 {dimension_numbers = #tpu.dot_dimension_numbers<[1], [0], [0], [1], [0, 0, 1, 1], [], []>} : vector<10x16xf32>, vector<16x16xf32>, vector<10x16xf32> -> vector<10x16xf32>
    %211 = vector.extract_strided_slice %202 {offsets = [16, 0], sizes = [16, 16], strides = [1, 1]} : vector<51x16xf32> to vector<16x16xf32>
    %cst_131 = arith.constant dense<0.000000e+00> : vector<10x16xf32>
    %212 = tpu.matmul %207, %211, %cst_131 {dimension_numbers = #tpu.dot_dimension_numbers<[1], [0], [0], [1], [0, 0, 1, 1], [], []>} : vector<10x16xf32>, vector<16x16xf32>, vector<10x16xf32> -> vector<10x16xf32>
    %213 = vector.extract_strided_slice %202 {offsets = [32, 0], sizes = [16, 16], strides = [1, 1]} : vector<51x16xf32> to vector<16x16xf32>
    %cst_132 = arith.constant dense<0.000000e+00> : vector<10x16xf32>
    %214 = tpu.matmul %208, %213, %cst_132 {dimension_numbers = #tpu.dot_dimension_numbers<[1], [0], [0], [1], [0, 0, 1, 1], [], []>} : vector<10x16xf32>, vector<16x16xf32>, vector<10x16xf32> -> vector<10x16xf32>
    %215 = arith.addf %210, %212 : vector<10x16xf32>
    %216 = arith.addf %215, %214 : vector<10x16xf32>
    %217 = vector.broadcast %203 : vector<1x16xf32> to vector<10x16xf32>
    %218 = arith.addf %216, %217 : vector<10x16xf32>
    %cst_133 = arith.constant dense<0.000000e+00> : vector<10xf32>
    %219 = vector.multi_reduction <add>, %218, %cst_133 [1] : vector<10x16xf32> to vector<10xf32>
    %220 = vector.shape_cast %219 : vector<10xf32> to vector<10x1xf32>
    %cst_134 = arith.constant 1.600000e+01 : f32
    %221 = vector.broadcast %cst_134 : f32 to vector<10x1xf32>
    %222 = arith.divf %220, %221 : vector<10x1xf32>
    %223 = vector.broadcast %222 : vector<10x1xf32> to vector<10x16xf32>
    %224 = arith.subf %218, %223 : vector<10x16xf32>
    %225 = arith.mulf %224, %224 : vector<10x16xf32>
    %cst_135 = arith.constant dense<0.000000e+00> : vector<10xf32>
    %226 = vector.multi_reduction <add>, %225, %cst_135 [1] : vector<10x16xf32> to vector<10xf32>
    %227 = vector.shape_cast %226 : vector<10xf32> to vector<10x1xf32>
    %cst_136 = arith.constant 1.600000e+01 : f32
    %228 = vector.broadcast %cst_136 : f32 to vector<10x1xf32>
    %229 = arith.divf %227, %228 : vector<10x1xf32>
    %cst_137 = arith.constant 9.99999974E-6 : f32
    %230 = vector.broadcast %cst_137 : f32 to vector<10x1xf32>
    %231 = arith.addf %229, %230 : vector<10x1xf32>
    %232 = math.rsqrt %231 : vector<10x1xf32>
    %233 = vector.broadcast %232 : vector<10x1xf32> to vector<10x16xf32>
    %234 = arith.mulf %224, %233 : vector<10x16xf32>
    %235 = vector.broadcast %204 : vector<1x16xf32> to vector<10x16xf32>
    %236 = arith.mulf %234, %235 : vector<10x16xf32>
    %237 = vector.broadcast %205 : vector<1x16xf32> to vector<10x16xf32>
    %238 = arith.addf %236, %237 : vector<10x16xf32>
    %239 = vector.extract_strided_slice %238 {offsets = [0, 0], sizes = [4, 16], strides = [1, 1]} : vector<10x16xf32> to vector<4x16xf32>
    %cst_138 = arith.constant dense<0xFF800000> : vector<16xf32>
    %240 = vector.multi_reduction <maximumf>, %239, %cst_138 [0] : vector<4x16xf32> to vector<16xf32>
    %241 = vector.shape_cast %240 : vector<16xf32> to vector<1x16xf32>
    %242 = vector.extract_strided_slice %238 {offsets = [6, 0], sizes = [4, 16], strides = [1, 1]} : vector<10x16xf32> to vector<4x16xf32>
    %cst_139 = arith.constant dense<0xFF800000> : vector<16xf32>
    %243 = vector.multi_reduction <maximumf>, %242, %cst_139 [0] : vector<4x16xf32> to vector<16xf32>
    %244 = vector.shape_cast %243 : vector<16xf32> to vector<1x16xf32>
    %245 = tpu.concatenate %241, %244 in 0 : vector<1x16xf32>, vector<1x16xf32> -> vector<2x16xf32>
    %c0_140 = arith.constant 0 : index
    %c0_141 = arith.constant 0 : index
    %246 = vector.load %arg2[%c0_140, %c0_141] : memref<2x16xf32, #tpu.memory_space<vmem>>, vector<2x16xf32>
    tpu.vector_store %arg2[%c0_140, %c0_141], %245 {strides = array<i32>} : memref<2x16xf32, #tpu.memory_space<vmem>>, vector<2x16xf32>,
    return
  }
}

</mosaic_0001>

<llo_original>
// kernel: tpu_custom_call.1
$region0: #{tpu_custom_call.1}
  #allocation0 [shape = 'u32[]', space=smem, size = 0x4, offset = 0x4, fixed_abs, tag = 'smem constant byte address 0x4 - core index']
  #allocation1 [shape = 'u32[72,128]{1,0:T(1,128)}', space=vmem, size = 0x9000, scoped, tag = 'internal scratch']
  #allocation2 [shape = 'f32[36,4]{1,0:T(8,128)}', space=vmem, size = 0x5000, scoped, tag = 'scratch operand']
  #allocation3 [shape = 'f32[20,8]{1,0:T(8,128)}', space=vmem, size = 0x3000, scoped, tag = 'scratch operand']
  #allocation4 [shape = 'f32[20,8]{1,0:T(8,128)}', space=vmem, size = 0x3000, scoped, tag = 'scratch operand']
  #allocation5 [shape = 'f32[20,8]{1,0:T(8,128)}', space=vmem, size = 0x3000, scoped, tag = 'scratch operand']
  #allocation6 [shape = 'f32[12,16]{1,0:T(8,128)}', space=vmem, size = 0x2000, scoped, tag = 'scratch operand']
  %s0 = inlined_call_operand.vmem [shape: f32[2,16,4], index: 0, kind: input, shape index: {}]
  %s1 = inlined_call_operand.vmem [shape: f32[168,16], index: 1, kind: input, shape index: {}]
  %s2 = inlined_call_operand.hbm [shape: f32[2,16], index: 2, kind: output, shape index: {}]
  %s3 = sld [smem:[#allocation0]]
  $region18: #{tpu_custom_call.1} parent=0
    _
  %s5 = ssub.s32 1, %s3
  %s6 = scalar_select 0, %s5, %s3
  $region1: #{tpu_custom_call.1} parent=0
    #allocation7 [shape = 'u8[1024]{0}', space=vmem, size = 0x400, scoped, tag = 'output window, operand 0, single buffered']
    #allocation8 [shape = 's32[1]{0}', space=sflag, size = 0x4, scoped, tag = 'scoped memory for tpu_custom_call.1']
    %7 = vsyncpa [#allocation8], 0
    // Predicated region
    $region2: #{tpu_custom_call.1} parent=1 // pred_check
      _
    $region3: #{tpu_custom_call.1} parent=1 // pred_check_branch
      %9 = sbr.rel (0) target = $region5
    $region4: #{tpu_custom_call.1} parent=1 // pred_region
      _
    $region5: #{tpu_custom_call.1} parent=1 // pred_fallthru
      _
    // Predicated region
    $region6: #{tpu_custom_call.1} parent=1 // pred_check
      _
    $region7: #{tpu_custom_call.1} parent=1 // pred_check_branch
      %11 = sbr.rel (0) target = $region9
    $region8: #{tpu_custom_call.1} parent=1 // pred_region
      _
    $region9: #{tpu_custom_call.1} parent=1 // pred_fallthru
      _
    %vm12 = vcmask 24576
    %13 = vst.msk [vmem:[#allocation2] sm:$0x1] %vm12, 0.0
    %vm14 = vcmask 25600
    %15 = vst.msk [vmem:[#allocation2 + $0x11] sm:$0x3] %vm14, 0.0
    %16 = vst.msk [vmem:[#allocation2 + $0x23] sm:$0x1] %vm12, 0.0
    %vm17 = vcmask 57344
    %18 = vst.msk [vmem:[#allocation3] sm:$0x1] %vm17, 0.0
    %vm19 = vcmask 58368
    %20 = vst.msk [vmem:[#allocation3 + $0x9] sm:$0x3] %vm19, 0.0
    %21 = vst.msk [vmem:[#allocation3 + $0x13] sm:$0x1] %vm17, 0.0
    %22 = vst.msk [vmem:[#allocation4] sm:$0x1] %vm17, 0.0
    %23 = vst.msk [vmem:[#allocation4 + $0x9] sm:$0x3] %vm19, 0.0
    %24 = vst.msk [vmem:[#allocation4 + $0x13] sm:$0x1] %vm17, 0.0
    %25 = vst.msk [vmem:[#allocation5] sm:$0x1] %vm17, 0.0
    %26 = vst.msk [vmem:[#allocation5 + $0x9] sm:$0x3] %vm19, 0.0
    %27 = vst.msk [vmem:[#allocation5 + $0x13] sm:$0x1] %vm17, 0.0
    %vm28 = vcmask 122880
    %29 = vst.msk [vmem:[#allocation6] sm:$0x1] %vm28, 0.0
    %vm30 = vcmask 123904
    %31 = vst.msk [vmem:[#allocation6 + $0x5] sm:$0x3] %vm30, 0.0
    %32 = vst.msk [vmem:[#allocation6 + $0xb] sm:$0x1] %vm28, 0.0
    %v33 = vld [vmem:[%s0] sm:$0xff]
    %v34 = vld [vmem:[%s0 + $0x8] sm:$0xff]
    %vm35 = vcmask 31744
    %36 = vst.msk [vmem:[#allocation2 + $0x1] sm:$0xff] %vm35, %v33
    %37 = vst.msk [vmem:[#allocation2 + $0x9] sm:$0xff] %vm35, %v34
    %s38 = scalar_lea.vmem %s0, 16
    %v39 = vld [vmem:[%s38] sm:$0xff]
    %v40 = vld [vmem:[%s38 + $0x8] sm:$0xff]
    %41 = vst.msk [vmem:[#allocation2 + $0x13] sm:$0xff] %vm35, %v39
    %42 = vst.msk [vmem:[#allocation2 + $0x1b] sm:$0xff] %vm35, %v40
    %v43 = vld [vmem:[%s1] sm:$0xff]
    %v44 = vld [vmem:[%s1 + $0x8] sm:$0x7f]
    %v45 = vld [vmem:[#allocation2] ss:$2 sm:$0xff]
    %s46 = scalar_lea.vmem [#allocation2], 16
    %v47 = vld [vmem:[%s46] ss:$2 sm:$0xff]
    %s48 = scalar_lea.vmem [#allocation2], 32
    %v49 = vld [vmem:[%s48] ss:$2 sm:$0x1]
    %s50 = scalar_lea.vmem [#allocation2], 1
    %v51 = vld [vmem:[%s50] ss:$2 sm:$0xff]
    %s52 = scalar_lea.vmem [#allocation2], 17
    %v53 = vld [vmem:[%s52] ss:$2 sm:$0xff]
    %s54 = scalar_lea.vmem [#allocation2], 33
    %v55 = vld [vmem:[%s54] ss:$2 sm:$0x1]
    %s56 = scalar_lea.vmem [#allocation2], 2
    %v57 = vld [vmem:[%s56] ss:$2 sm:$0xff]
    %s58 = scalar_lea.vmem [#allocation2], 18
    %v59 = vld [vmem:[%s58] ss:$2 sm:$0xff]
    %s60 = scalar_lea.vmem [#allocation2], 34
    %v61 = vld [vmem:[%s60] ss:$2 sm:$0x1]
    %v63 = vrot.slane %v43, 4
    %v65 = vsel %vm35, %v51, 0
    %v68 = vsel %vm35, %v53, 0
    %v71 = vsel %vm35, %v55, 0
    %vm73 = vcmask 1043456
    %v74 = vsel %vm73, %v63, 0
    %76 = vmatpush.msra.mxu0 0.0
    %77 = vmatpush.msra.mxu0 0.0
    %78 = vmatpush.msra.mxu0 0.0
    %79 = vmatpush.msra.mxu0 0.0
    %80 = vmatpush.msra.mxu0 0.0
    %81 = vmatpush.msra.mxu0 0.0
    %82 = vmatpush.msra.mxu0 0.0
    %83 = vmatpush.msra.mxu0 0.0
    %84 = vmatpush.msra.mxu0 0.0
    %85 = vmatpush.msra.mxu0 0.0
    %86 = vmatpush.msra.mxu0 0.0
    %87 = vmatpush.msra.mxu0 0.0
    %88 = vmatpush.msra.mxu0 0.0
    %89 = vmatpush.msra.mxu0 0.0
    %90 = vmatpush.msra.mxu0 0.0
    %91 = vmatpush.msra.mxu0 %v74
    %92 = vmatmul.f32.gmra.mxu0 %v65
    %v93 = vpop.f32.mrf.mxu0
    %v94 = vadd.f32 0.0, %v93
    %95 = vmatmul.f32.gmra.mxu0 %v68
    %v96 = vpop.f32.mrf.mxu0
    %v97 = vadd.f32 0.0, %v96
    %98 = vmatmul.f32.gmra.mxu0 %v71
    %v99 = vpop.f32.mrf.mxu0
    %v100 = vadd.f32 0.0, %v99
    %101 = vdwg.mxu0
    %v103 = vsel %vm35, %v57, 0
    %v106 = vsel %vm35, %v59, 0
    %v109 = vsel %vm35, %v61, 0
    %v112 = vsel %vm73, %v44, 0
    %114 = vmatpush.msra.mxu0 0.0
    %115 = vmatpush.msra.mxu0 0.0
    %116 = vmatpush.msra.mxu0 0.0
    %117 = vmatpush.msra.mxu0 0.0
    %118 = vmatpush.msra.mxu0 0.0
    %119 = vmatpush.msra.mxu0 0.0
    %120 = vmatpush.msra.mxu0 0.0
    %121 = vmatpush.msra.mxu0 0.0
    %122 = vmatpush.msra.mxu0 0.0
    %123 = vmatpush.msra.mxu0 0.0
    %124 = vmatpush.msra.mxu0 0.0
    %125 = vmatpush.msra.mxu0 0.0
    %126 = vmatpush.msra.mxu0 0.0
    %127 = vmatpush.msra.mxu0 0.0
    %128 = vmatpush.msra.mxu0 0.0
    %129 = vmatpush.msra.mxu0 %v112
    %130 = vmatmul.f32.gmra.mxu0 %v103
    %v131 = vpop.f32.mrf.mxu0
    %v132 = vadd.f32 0.0, %v131
    %133 = vmatmul.f32.gmra.mxu0 %v106
    %v134 = vpop.f32.mrf.mxu0
    %v135 = vadd.f32 0.0, %v134
    %136 = vmatmul.f32.gmra.mxu0 %v109
    %v137 = vpop.f32.mrf.mxu0
    %v138 = vadd.f32 0.0, %v137
    %139 = vdwg.mxu0
    %v141 = vsel %vm35, %v45, 0
    %v144 = vsel %vm35, %v47, 0
    %v147 = vsel %vm35, %v49, 0
    %v149 = vsel %vm73, %v43, 0
    %151 = vmatpush.msra.mxu0 0.0
    %152 = vmatpush.msra.mxu0 0.0
    %153 = vmatpush.msra.mxu0 0.0
    %154 = vmatpush.msra.mxu0 0.0
    %155 = vmatpush.msra.mxu0 0.0
    %156 = vmatpush.msra.mxu0 0.0
    %157 = vmatpush.msra.mxu0 0.0
    %158 = vmatpush.msra.mxu0 0.0
    %159 = vmatpush.msra.mxu0 0.0
    %160 = vmatpush.msra.mxu0 0.0
    %161 = vmatpush.msra.mxu0 0.0
    %162 = vmatpush.msra.mxu0 0.0
    %163 = vmatpush.msra.mxu0 0.0
    %164 = vmatpush.msra.mxu0 0.0
    %165 = vmatpush.msra.mxu0 0.0
    %166 = vmatpush.msra.mxu0 %v149
    %167 = vmatmul.f32.gmra.mxu0 %v141
    %v168 = vpop.f32.mrf.mxu0
    %v169 = vadd.f32 %v94, %v168
    %170 = vmatmul.f32.gmra.mxu0 %v144
    %v171 = vpop.f32.mrf.mxu0
    %v172 = vadd.f32 %v97, %v171
    %173 = vmatmul.f32.gmra.mxu0 %v147
    %v174 = vpop.f32.mrf.mxu0
    %v175 = vadd.f32 %v100, %v174
    %176 = vdwg.mxu0
    %v177 = vadd.f32 %v169, %v132
    %v178 = vadd.f32 %v172, %v135
    %v179 = vadd.f32 %v175, %v138
    %v180 = vperm.slane %v44, 4
    %v181 = vadd.f32 %v177, %v180
    %v182 = vadd.f32 %v178, %v180
    %v183 = vadd.f32 %v179, %v180
    %vm184 = vcmask 64512
    %v185 = vsel %vm184, %v181, 0.0
    %186 = vadd.xlane.f32.xlu0 %v185
    %v187 = vpop.xlane.xlu0 %186
    %v188 = vsel %vm184, %v182, 0.0
    %189 = vadd.xlane.f32.xlu0 %v188
    %v190 = vpop.xlane.xlu0 %189
    %v191 = vsel %vm17, %v183, 0.0
    %192 = vadd.xlane.f32.xlu0 %v191
    %v193 = vpop.xlane.xlu0 %192
    %v194 = vrcp.pop 8.0
    %v195 = vmul.f32 8.0, %v194
    %v196 = vsub.f32 1.0, %v195
    %v197 = vmul.f32 %v194, %v196
    %v198 = vadd.f32 %v194, %v197
    %vm199 = vweird.f32 %v194
    %v200 = vsel %vm199, %v194, %v198
    %v201 = vmul.f32 %v187, %v200
    %v202 = vmul.f32 %v190, %v200
    %v203 = vmul.f32 %v193, %v200
    %v204 = vsub.f32 %v181, %v201
    %v205 = vsub.f32 %v182, %v202
    %v206 = vsub.f32 %v183, %v203
    %v207 = vmul.f32 %v204, %v204
    %v208 = vmul.f32 %v205, %v205
    %v209 = vmul.f32 %v206, %v206
    %v210 = vsel %vm184, %v207, 0.0
    %211 = vadd.xlane.f32.xlu0 %v210
    %v212 = vpop.xlane.xlu0 %211
    %v213 = vsel %vm184, %v208, 0.0
    %214 = vadd.xlane.f32.xlu0 %v213
    %v215 = vpop.xlane.xlu0 %214
    %v216 = vsel %vm17, %v209, 0.0
    %217 = vadd.xlane.f32.xlu0 %v216
    %v218 = vpop.xlane.xlu0 %217
    %v219 = vmul.f32 %v212, %v200
    %v220 = vmul.f32 %v215, %v200
    %v221 = vmul.f32 %v218, %v200
    %v222 = vadd.f32 %v219, 1e-05
    %v223 = vadd.f32 %v220, 1e-05
    %v224 = vadd.f32 %v221, 1e-05
    %v225 = vrsqrt.pop %v222
    %v226 = vmul.f32 %v225, %v222
    %v227 = vmul.f32 %v226, %v225
    %v228 = vmul.f32 0.5, %v227
    %v229 = vsub.f32 1.5, %v228
    %v230 = vmul.f32 %v225, %v229
    %vm231 = vweird.f32 %v222
    %vm232 = vweird.f32 %v225
    %vm233 = vmor %vm231, %vm232
    %v234 = vsel %vm233, %v225, %v230
    %v235 = vrsqrt.pop %v223
    %v236 = vmul.f32 %v235, %v223
    %v237 = vmul.f32 %v236, %v235
    %v238 = vmul.f32 0.5, %v237
    %v239 = vsub.f32 1.5, %v238
    %v240 = vmul.f32 %v235, %v239
    %vm241 = vweird.f32 %v223
    %vm242 = vweird.f32 %v235
    %vm243 = vmor %vm241, %vm242
    %v244 = vsel %vm243, %v235, %v240
    %v245 = vrsqrt.pop %v224
    %v246 = vmul.f32 %v245, %v224
    %v247 = vmul.f32 %v246, %v245
    %v248 = vmul.f32 0.5, %v247
    %v249 = vsub.f32 1.5, %v248
    %v250 = vmul.f32 %v245, %v249
    %vm251 = vweird.f32 %v224
    %vm252 = vweird.f32 %v245
    %vm253 = vmor %vm251, %vm252
    %v254 = vsel %vm253, %v245, %v250
    %v255 = vmul.f32 %v204, %v234
    %v256 = vmul.f32 %v205, %v244
    %v257 = vmul.f32 %v206, %v254
    %v258 = vperm.slane %v44, 5
    %v259 = vmul.f32 %v255, %v258
    %v260 = vmul.f32 %v256, %v258
    %v261 = vmul.f32 %v257, %v258
    %v262 = vperm.slane %v44, 6
    %v263 = vadd.f32 %v259, %v262
    %v264 = vadd.f32 %v260, %v262
    %v265 = vadd.f32 %v261, %v262
    %266 = vst.msk [vmem:[#allocation3 + $0x1] sm:$0xff] %vm184, %v263
    %vm267 = vcmask 64513
    %268 = vst.msk [vmem:[#allocation3 + $0xa] sm:$0xfe] %vm267, %v264
    %269 = vst.msk [vmem:[#allocation3 + $0x12] sm:$0x1] %vm17, %v265
    %v270 = vld [vmem:[%s1 + $0x10] sm:$0xff]
    %v271 = vld [vmem:[%s1 + $0x18] sm:$0xff]
    %v272 = vld [vmem:[%s1 + $0x20] sm:$0xff]
    %v273 = vld [vmem:[%s1 + $0x28] sm:$0x7]
    %v274 = vld [vmem:[#allocation3] sm:$0xff]
    %v275 = vld [vmem:[#allocation3 + $0x8] sm:$0xff]
    %v276 = vld [vmem:[#allocation3 + $0x10] sm:$0x3]
    %v277 = vld [vmem:[#allocation3 + $0x1] sm:$0xff]
    %v278 = vld [vmem:[#allocation3 + $0x9] sm:$0xff]
    %v279 = vld [vmem:[#allocation3 + $0x11] sm:$0x3]
    %v280 = vld [vmem:[#allocation3 + $0x2] sm:$0xff]
    %v281 = vld [vmem:[#allocation3 + $0xa] sm:$0xff]
    %v282 = vld [vmem:[#allocation3 + $0x12] sm:$0x3]
    %v284 = vsel %vm184, %v277, 0
    %v287 = vsel %vm184, %v278, 0
    %v290 = vsel %vm184, %v279, 0
    %292 = vmatpush.msra.mxu0 0.0
    %293 = vmatpush.msra.mxu0 0.0
    %294 = vmatpush.msra.mxu0 0.0
    %295 = vmatpush.msra.mxu0 0.0
    %296 = vmatpush.msra.mxu0 0.0
    %297 = vmatpush.msra.mxu0 0.0
    %298 = vmatpush.msra.mxu0 0.0
    %299 = vmatpush.msra.mxu0 0.0
    %300 = vmatpush.msra.mxu0 0.0
    %301 = vmatpush.msra.mxu0 0.0
    %302 = vmatpush.msra.mxu0 0.0
    %303 = vmatpush.msra.mxu0 0.0
    %304 = vmatpush.msra.mxu0 0.0
    %305 = vmatpush.msra.mxu0 0.0
    %306 = vmatpush.msra.mxu0 0.0
    %307 = vmatpush.msra.mxu0 %v271
    %308 = vmatmul.f32.gmra.mxu0 %v284
    %v309 = vpop.f32.mrf.mxu0
    %v310 = vadd.f32 0.0, %v309
    %311 = vmatmul.f32.gmra.mxu0 %v287
    %v312 = vpop.f32.mrf.mxu0
    %v313 = vadd.f32 0.0, %v312
    %314 = vmatmul.f32.gmra.mxu0 %v290
    %v315 = vpop.f32.mrf.mxu0
    %v316 = vadd.f32 0.0, %v315
    %317 = vdwg.mxu0
    %v319 = vsel %vm184, %v280, 0
    %v322 = vsel %vm184, %v281, 0
    %v325 = vsel %vm184, %v282, 0
    %327 = vmatpush.msra.mxu0 0.0
    %328 = vmatpush.msra.mxu0 0.0
    %329 = vmatpush.msra.mxu0 0.0
    %330 = vmatpush.msra.mxu0 0.0
    %331 = vmatpush.msra.mxu0 0.0
    %332 = vmatpush.msra.mxu0 0.0
    %333 = vmatpush.msra.mxu0 0.0
    %334 = vmatpush.msra.mxu0 0.0
    %335 = vmatpush.msra.mxu0 0.0
    %336 = vmatpush.msra.mxu0 0.0
    %337 = vmatpush.msra.mxu0 0.0
    %338 = vmatpush.msra.mxu0 0.0
    %339 = vmatpush.msra.mxu0 0.0
    %340 = vmatpush.msra.mxu0 0.0
    %341 = vmatpush.msra.mxu0 0.0
    %342 = vmatpush.msra.mxu0 %v272
    %343 = vmatmul.f32.gmra.mxu0 %v319
    %v344 = vpop.f32.mrf.mxu0
    %v345 = vadd.f32 0.0, %v344
    %346 = vmatmul.f32.gmra.mxu0 %v322
    %v347 = vpop.f32.mrf.mxu0
    %v348 = vadd.f32 0.0, %v347
    %349 = vmatmul.f32.gmra.mxu0 %v325
    %v350 = vpop.f32.mrf.mxu0
    %v351 = vadd.f32 0.0, %v350
    %352 = vdwg.mxu0
    %v354 = vsel %vm184, %v274, 0
    %v357 = vsel %vm184, %v275, 0
    %v360 = vsel %vm184, %v276, 0
    %362 = vmatpush.msra.mxu0 0.0
    %363 = vmatpush.msra.mxu0 0.0
    %364 = vmatpush.msra.mxu0 0.0
    %365 = vmatpush.msra.mxu0 0.0
    %366 = vmatpush.msra.mxu0 0.0
    %367 = vmatpush.msra.mxu0 0.0
    %368 = vmatpush.msra.mxu0 0.0
    %369 = vmatpush.msra.mxu0 0.0
    %370 = vmatpush.msra.mxu0 0.0
    %371 = vmatpush.msra.mxu0 0.0
    %372 = vmatpush.msra.mxu0 0.0
    %373 = vmatpush.msra.mxu0 0.0
    %374 = vmatpush.msra.mxu0 0.0
    %375 = vmatpush.msra.mxu0 0.0
    %376 = vmatpush.msra.mxu0 0.0
    %377 = vmatpush.msra.mxu0 %v270
    %378 = vmatmul.f32.gmra.mxu0 %v354
    %v379 = vpop.f32.mrf.mxu0
    %v380 = vadd.f32 %v310, %v379
    %381 = vmatmul.f32.gmra.mxu0 %v357
    %v382 = vpop.f32.mrf.mxu0
    %v383 = vadd.f32 %v313, %v382
    %384 = vmatmul.f32.gmra.mxu0 %v360
    %v385 = vpop.f32.mrf.mxu0
    %v386 = vadd.f32 %v316, %v385
    %387 = vdwg.mxu0
    %v388 = vadd.f32 %v380, %v345
    %v389 = vadd.f32 %v383, %v348
    %v390 = vadd.f32 %v386, %v351
    %v391 = vperm.slane %v273, 0
    %v392 = vadd.f32 %v388, %v391
    %v393 = vadd.f32 %v389, %v391
    %v394 = vadd.f32 %v390, %v391
    %v395 = vsel %vm184, %v392, 0.0
    %396 = vadd.xlane.f32.xlu0 %v395
    %v397 = vpop.xlane.xlu0 %396
    %v398 = vsel %vm184, %v393, 0.0
    %399 = vadd.xlane.f32.xlu0 %v398
    %v400 = vpop.xlane.xlu0 %399
    %v401 = vsel %vm19, %v394, 0.0
    %402 = vadd.xlane.f32.xlu0 %v401
    %v403 = vpop.xlane.xlu0 %402
    %v404 = vmul.f32 %v397, %v200
    %v405 = vmul.f32 %v400, %v200
    %v406 = vmul.f32 %v403, %v200
    %v407 = vsub.f32 %v392, %v404
    %v408 = vsub.f32 %v393, %v405
    %v409 = vsub.f32 %v394, %v406
    %v410 = vmul.f32 %v407, %v407
    %v411 = vmul.f32 %v408, %v408
    %v412 = vmul.f32 %v409, %v409
    %v413 = vsel %vm184, %v410, 0.0
    %414 = vadd.xlane.f32.xlu0 %v413
    %v415 = vpop.xlane.xlu0 %414
    %v416 = vsel %vm184, %v411, 0.0
    %417 = vadd.xlane.f32.xlu0 %v416
    %v418 = vpop.xlane.xlu0 %417
    %v419 = vsel %vm19, %v412, 0.0
    %420 = vadd.xlane.f32.xlu0 %v419
    %v421 = vpop.xlane.xlu0 %420
    %v422 = vmul.f32 %v415, %v200
    %v423 = vmul.f32 %v418, %v200
    %v424 = vmul.f32 %v421, %v200
    %v425 = vadd.f32 %v422, 1e-05
    %v426 = vadd.f32 %v423, 1e-05
    %v427 = vadd.f32 %v424, 1e-05
    %v428 = vrsqrt.pop %v425
    %v429 = vmul.f32 %v428, %v425
    %v430 = vmul.f32 %v429, %v428
    %v431 = vmul.f32 0.5, %v430
    %v432 = vsub.f32 1.5, %v431
    %v433 = vmul.f32 %v428, %v432
    %vm434 = vweird.f32 %v425
    %vm435 = vweird.f32 %v428
    %vm436 = vmor %vm434, %vm435
    %v437 = vsel %vm436, %v428, %v433
    %v438 = vrsqrt.pop %v426
    %v439 = vmul.f32 %v438, %v426
    %v440 = vmul.f32 %v439, %v438
    %v441 = vmul.f32 0.5, %v440
    %v442 = vsub.f32 1.5, %v441
    %v443 = vmul.f32 %v438, %v442
    %vm444 = vweird.f32 %v426
    %vm445 = vweird.f32 %v438
    %vm446 = vmor %vm444, %vm445
    %v447 = vsel %vm446, %v438, %v443
    %v448 = vrsqrt.pop %v427
    %v449 = vmul.f32 %v448, %v427
    %v450 = vmul.f32 %v449, %v448
    %v451 = vmul.f32 0.5, %v450
    %v452 = vsub.f32 1.5, %v451
    %v453 = vmul.f32 %v448, %v452
    %vm454 = vweird.f32 %v427
    %vm455 = vweird.f32 %v448
    %vm456 = vmor %vm454, %vm455
    %v457 = vsel %vm456, %v448, %v453
    %v458 = vmul.f32 %v407, %v437
    %v459 = vmul.f32 %v408, %v447
    %v460 = vmul.f32 %v409, %v457
    %v461 = vperm.slane %v273, 1
    %v462 = vmul.f32 %v458, %v461
    %v463 = vmul.f32 %v459, %v461
    %v464 = vmul.f32 %v460, %v461
    %v465 = vperm.slane %v273, 2
    %v466 = vadd.f32 %v462, %v465
    %v467 = vadd.f32 %v463, %v465
    %v468 = vadd.f32 %v464, %v465
    %469 = vst.msk [vmem:[#allocation4 + $0x1] sm:$0xff] %vm184, %v466
    %vm470 = vcmask 64514
    %471 = vst.msk [vmem:[#allocation4 + $0x9] sm:$0xfc] %vm470, %v467
    %472 = vst.msk [vmem:[#allocation4 + $0x11] sm:$0x3] %vm19, %v468
    %v473 = vld [vmem:[%s1 + $0x30] sm:$0xff]
    %v474 = vld [vmem:[%s1 + $0x38] sm:$0xff]
    %v475 = vld [vmem:[%s1 + $0x40] sm:$0xff]
    %v476 = vld [vmem:[%s1 + $0x48] sm:$0x7]
    %v477 = vld [vmem:[#allocation4] sm:$0xff]
    %v478 = vld [vmem:[#allocation4 + $0x8] sm:$0xff]
    %v479 = vld [vmem:[#allocation4 + $0x10] sm:$0x3]
    %v480 = vld [vmem:[#allocation4 + $0x1] sm:$0xff]
    %v481 = vld [vmem:[#allocation4 + $0x9] sm:$0xff]
    %v482 = vld [vmem:[#allocation4 + $0x11] sm:$0x3]
    %v483 = vld [vmem:[#allocation4 + $0x2] sm:$0xff]
    %v484 = vld [vmem:[#allocation4 + $0xa] sm:$0xff]
    %v485 = vld [vmem:[#allocation4 + $0x12] sm:$0x3]
    %v487 = vsel %vm184, %v480, 0
    %v490 = vsel %vm184, %v481, 0
    %v493 = vsel %vm184, %v482, 0
    %495 = vmatpush.msra.mxu0 0.0
    %496 = vmatpush.msra.mxu0 0.0
    %497 = vmatpush.msra.mxu0 0.0
    %498 = vmatpush.msra.mxu0 0.0
    %499 = vmatpush.msra.mxu0 0.0
    %500 = vmatpush.msra.mxu0 0.0
    %501 = vmatpush.msra.mxu0 0.0
    %502 = vmatpush.msra.mxu0 0.0
    %503 = vmatpush.msra.mxu0 0.0
    %504 = vmatpush.msra.mxu0 0.0
    %505 = vmatpush.msra.mxu0 0.0
    %506 = vmatpush.msra.mxu0 0.0
    %507 = vmatpush.msra.mxu0 0.0
    %508 = vmatpush.msra.mxu0 0.0
    %509 = vmatpush.msra.mxu0 0.0
    %510 = vmatpush.msra.mxu0 %v474
    %511 = vmatmul.f32.gmra.mxu0 %v487
    %v512 = vpop.f32.mrf.mxu0
    %v513 = vadd.f32 0.0, %v512
    %514 = vmatmul.f32.gmra.mxu0 %v490
    %v515 = vpop.f32.mrf.mxu0
    %v516 = vadd.f32 0.0, %v515
    %517 = vmatmul.f32.gmra.mxu0 %v493
    %v518 = vpop.f32.mrf.mxu0
    %v519 = vadd.f32 0.0, %v518
    %520 = vdwg.mxu0
    %v522 = vsel %vm184, %v483, 0
    %v525 = vsel %vm184, %v484, 0
    %v528 = vsel %vm184, %v485, 0
    %530 = vmatpush.msra.mxu0 0.0
    %531 = vmatpush.msra.mxu0 0.0
    %532 = vmatpush.msra.mxu0 0.0
    %533 = vmatpush.msra.mxu0 0.0
    %534 = vmatpush.msra.mxu0 0.0
    %535 = vmatpush.msra.mxu0 0.0
    %536 = vmatpush.msra.mxu0 0.0
    %537 = vmatpush.msra.mxu0 0.0
    %538 = vmatpush.msra.mxu0 0.0
    %539 = vmatpush.msra.mxu0 0.0
    %540 = vmatpush.msra.mxu0 0.0
    %541 = vmatpush.msra.mxu0 0.0
    %542 = vmatpush.msra.mxu0 0.0
    %543 = vmatpush.msra.mxu0 0.0
    %544 = vmatpush.msra.mxu0 0.0
    %545 = vmatpush.msra.mxu0 %v475
    %546 = vmatmul.f32.gmra.mxu0 %v522
    %v547 = vpop.f32.mrf.mxu0
    %v548 = vadd.f32 0.0, %v547
    %549 = vmatmul.f32.gmra.mxu0 %v525
    %v550 = vpop.f32.mrf.mxu0
    %v551 = vadd.f32 0.0, %v550
    %552 = vmatmul.f32.gmra.mxu0 %v528
    %v553 = vpop.f32.mrf.mxu0
    %v554 = vadd.f32 0.0, %v553
    %555 = vdwg.mxu0
    %v557 = vsel %vm184, %v477, 0
    %v560 = vsel %vm184, %v478, 0
    %v563 = vsel %vm184, %v479, 0
    %565 = vmatpush.msra.mxu0 0.0
    %566 = vmatpush.msra.mxu0 0.0
    %567 = vmatpush.msra.mxu0 0.0
    %568 = vmatpush.msra.mxu0 0.0
    %569 = vmatpush.msra.mxu0 0.0
    %570 = vmatpush.msra.mxu0 0.0
    %571 = vmatpush.msra.mxu0 0.0
    %572 = vmatpush.msra.mxu0 0.0
    %573 = vmatpush.msra.mxu0 0.0
    %574 = vmatpush.msra.mxu0 0.0
    %575 = vmatpush.msra.mxu0 0.0
    %576 = vmatpush.msra.mxu0 0.0
    %577 = vmatpush.msra.mxu0 0.0
    %578 = vmatpush.msra.mxu0 0.0
    %579 = vmatpush.msra.mxu0 0.0
    %580 = vmatpush.msra.mxu0 %v473
    %581 = vmatmul.f32.gmra.mxu0 %v557
    %v582 = vpop.f32.mrf.mxu0
    %v583 = vadd.f32 %v513, %v582
    %584 = vmatmul.f32.gmra.mxu0 %v560
    %v585 = vpop.f32.mrf.mxu0
    %v586 = vadd.f32 %v516, %v585
    %587 = vmatmul.f32.gmra.mxu0 %v563
    %v588 = vpop.f32.mrf.mxu0
    %v589 = vadd.f32 %v519, %v588
    %590 = vdwg.mxu0
    %v591 = vadd.f32 %v583, %v548
    %v592 = vadd.f32 %v586, %v551
    %v593 = vadd.f32 %v589, %v554
    %v594 = vperm.slane %v476, 0
    %v595 = vadd.f32 %v591, %v594
    %v596 = vadd.f32 %v592, %v594
    %v597 = vadd.f32 %v593, %v594
    %v598 = vsel %vm184, %v595, 0.0
    %599 = vadd.xlane.f32.xlu0 %v598
    %v600 = vpop.xlane.xlu0 %599
    %v601 = vsel %vm184, %v596, 0.0
    %602 = vadd.xlane.f32.xlu0 %v601
    %v603 = vpop.xlane.xlu0 %602
    %v604 = vsel %vm19, %v597, 0.0
    %605 = vadd.xlane.f32.xlu0 %v604
    %v606 = vpop.xlane.xlu0 %605
    %v607 = vmul.f32 %v600, %v200
    %v608 = vmul.f32 %v603, %v200
    %v609 = vmul.f32 %v606, %v200
    %v610 = vsub.f32 %v595, %v607
    %v611 = vsub.f32 %v596, %v608
    %v612 = vsub.f32 %v597, %v609
    %v613 = vmul.f32 %v610, %v610
    %v614 = vmul.f32 %v611, %v611
    %v615 = vmul.f32 %v612, %v612
    %v616 = vsel %vm184, %v613, 0.0
    %617 = vadd.xlane.f32.xlu0 %v616
    %v618 = vpop.xlane.xlu0 %617
    %v619 = vsel %vm184, %v614, 0.0
    %620 = vadd.xlane.f32.xlu0 %v619
    %v621 = vpop.xlane.xlu0 %620
    %v622 = vsel %vm19, %v615, 0.0
    %623 = vadd.xlane.f32.xlu0 %v622
    %v624 = vpop.xlane.xlu0 %623
    %v625 = vmul.f32 %v618, %v200
    %v626 = vmul.f32 %v621, %v200
    %v627 = vmul.f32 %v624, %v200
    %v628 = vadd.f32 %v625, 1e-05
    %v629 = vadd.f32 %v626, 1e-05
    %v630 = vadd.f32 %v627, 1e-05
    %v631 = vrsqrt.pop %v628
    %v632 = vmul.f32 %v631, %v628
    %v633 = vmul.f32 %v632, %v631
    %v634 = vmul.f32 0.5, %v633
    %v635 = vsub.f32 1.5, %v634
    %v636 = vmul.f32 %v631, %v635
    %vm637 = vweird.f32 %v628
    %vm638 = vweird.f32 %v631
    %vm639 = vmor %vm637, %vm638
    %v640 = vsel %vm639, %v631, %v636
    %v641 = vrsqrt.pop %v629
    %v642 = vmul.f32 %v641, %v629
    %v643 = vmul.f32 %v642, %v641
    %v644 = vmul.f32 0.5, %v643
    %v645 = vsub.f32 1.5, %v644
    %v646 = vmul.f32 %v641, %v645
    %vm647 = vweird.f32 %v629
    %vm648 = vweird.f32 %v641
    %vm649 = vmor %vm647, %vm648
    %v650 = vsel %vm649, %v641, %v646
    %v651 = vrsqrt.pop %v630
    %v652 = vmul.f32 %v651, %v630
    %v653 = vmul.f32 %v652, %v651
    %v654 = vmul.f32 0.5, %v653
    %v655 = vsub.f32 1.5, %v654
    %v656 = vmul.f32 %v651, %v655
    %vm657 = vweird.f32 %v630
    %vm658 = vweird.f32 %v651
    %vm659 = vmor %vm657, %vm658
    %v660 = vsel %vm659, %v651, %v656
    %v661 = vmul.f32 %v610, %v640
    %v662 = vmul.f32 %v611, %v650
    %v663 = vmul.f32 %v612, %v660
    %v664 = vperm.slane %v476, 1
    %v665 = vmul.f32 %v661, %v664
    %v666 = vmul.f32 %v662, %v664
    %v667 = vmul.f32 %v663, %v664
    %v668 = vperm.slane %v476, 2
    %v669 = vadd.f32 %v665, %v668
    %v670 = vadd.f32 %v666, %v668
    %v671 = vadd.f32 %v667, %v668
    %v672 = vadd.f32 %v669, %v480
    %v673 = vadd.f32 %v670, %v481
    %v674 = vadd.f32 %v671, %v482
    %675 = vst.msk [vmem:[#allocation5 + $0x1] sm:$0xff] %vm184, %v672
    %676 = vst.msk [vmem:[#allocation5 + $0x9] sm:$0xfc] %vm470, %v673
    %677 = vst.msk [vmem:[#allocation5 + $0x11] sm:$0x3] %vm19, %v674
    %v678 = vld [vmem:[%s1 + $0x50] sm:$0xff]
    %v679 = vld [vmem:[%s1 + $0x58] sm:$0xff]
    %v680 = vld [vmem:[%s1 + $0x60] sm:$0xff]
    %v681 = vld [vmem:[%s1 + $0x68] sm:$0x7]
    %v682 = vld [vmem:[#allocation5] ss:$2 sm:$0xff]
    %s683 = scalar_lea.vmem [#allocation5], 16
    %v684 = vld [vmem:[%s683] ss:$2 sm:$0x1]
    %s685 = scalar_lea.vmem [#allocation5], 1
    %v686 = vld [vmem:[%s685] ss:$2 sm:$0xff]
    %s687 = scalar_lea.vmem [#allocation5], 17
    %v688 = vld [vmem:[%s687] ss:$2 sm:$0x1]
    %s689 = scalar_lea.vmem [#allocation5], 2
    %v690 = vld [vmem:[%s689] ss:$2 sm:$0xff]
    %s691 = scalar_lea.vmem [#allocation5], 18
    %v692 = vld [vmem:[%s691] ss:$2 sm:$0x1]
    %v694 = vsel %vm184, %v686, 0
    %v697 = vsel %vm184, %v688, 0
    %699 = vmatpush.msra.mxu0 0.0
    %700 = vmatpush.msra.mxu0 0.0
    %701 = vmatpush.msra.mxu0 0.0
    %702 = vmatpush.msra.mxu0 0.0
    %703 = vmatpush.msra.mxu0 0.0
    %704 = vmatpush.msra.mxu0 0.0
    %705 = vmatpush.msra.mxu0 0.0
    %706 = vmatpush.msra.mxu0 0.0
    %707 = vmatpush.msra.mxu0 0.0
    %708 = vmatpush.msra.mxu0 0.0
    %709 = vmatpush.msra.mxu0 0.0
    %710 = vmatpush.msra.mxu0 0.0
    %711 = vmatpush.msra.mxu0 0.0
    %712 = vmatpush.msra.mxu0 0.0
    %713 = vmatpush.msra.mxu0 0.0
    %714 = vmatpush.msra.mxu0 %v679
    %715 = vmatmul.f32.gmra.mxu0 %v694
    %v716 = vpop.f32.mrf.mxu0
    %v717 = vadd.f32 0.0, %v716
    %718 = vmatmul.f32.gmra.mxu0 %v697
    %v719 = vpop.f32.mrf.mxu0
    %v720 = vadd.f32 0.0, %v719
    %721 = vdwg.mxu0
    %v723 = vsel %vm184, %v690, 0
    %v726 = vsel %vm184, %v692, 0
    %728 = vmatpush.msra.mxu0 0.0
    %729 = vmatpush.msra.mxu0 0.0
    %730 = vmatpush.msra.mxu0 0.0
    %731 = vmatpush.msra.mxu0 0.0
    %732 = vmatpush.msra.mxu0 0.0
    %733 = vmatpush.msra.mxu0 0.0
    %734 = vmatpush.msra.mxu0 0.0
    %735 = vmatpush.msra.mxu0 0.0
    %736 = vmatpush.msra.mxu0 0.0
    %737 = vmatpush.msra.mxu0 0.0
    %738 = vmatpush.msra.mxu0 0.0
    %739 = vmatpush.msra.mxu0 0.0
    %740 = vmatpush.msra.mxu0 0.0
    %741 = vmatpush.msra.mxu0 0.0
    %742 = vmatpush.msra.mxu0 0.0
    %743 = vmatpush.msra.mxu0 %v680
    %744 = vmatmul.f32.gmra.mxu0 %v723
    %v745 = vpop.f32.mrf.mxu0
    %v746 = vadd.f32 0.0, %v745
    %747 = vmatmul.f32.gmra.mxu0 %v726
    %v748 = vpop.f32.mrf.mxu0
    %v749 = vadd.f32 0.0, %v748
    %750 = vdwg.mxu0
    %v752 = vsel %vm184, %v682, 0
    %v755 = vsel %vm184, %v684, 0
    %757 = vmatpush.msra.mxu0 0.0
    %758 = vmatpush.msra.mxu0 0.0
    %759 = vmatpush.msra.mxu0 0.0
    %760 = vmatpush.msra.mxu0 0.0
    %761 = vmatpush.msra.mxu0 0.0
    %762 = vmatpush.msra.mxu0 0.0
    %763 = vmatpush.msra.mxu0 0.0
    %764 = vmatpush.msra.mxu0 0.0
    %765 = vmatpush.msra.mxu0 0.0
    %766 = vmatpush.msra.mxu0 0.0
    %767 = vmatpush.msra.mxu0 0.0
    %768 = vmatpush.msra.mxu0 0.0
    %769 = vmatpush.msra.mxu0 0.0
    %770 = vmatpush.msra.mxu0 0.0
    %771 = vmatpush.msra.mxu0 0.0
    %772 = vmatpush.msra.mxu0 %v678
    %773 = vmatmul.f32.gmra.mxu0 %v752
    %v774 = vpop.f32.mrf.mxu0
    %v775 = vadd.f32 %v717, %v774
    %776 = vmatmul.f32.gmra.mxu0 %v755
    %v777 = vpop.f32.mrf.mxu0
    %v778 = vadd.f32 %v720, %v777
    %779 = vdwg.mxu0
    %v780 = vadd.f32 %v775, %v746
    %v781 = vadd.f32 %v778, %v749
    %v782 = vperm.slane %v681, 0
    %v783 = vadd.f32 %v780, %v782
    %v784 = vadd.f32 %v781, %v782
    %vm785 = vcmask 130048
    %v786 = vsel %vm785, %v783, 0.0
    %787 = vadd.xlane.f32.xlu0 %v786
    %v788 = vpop.xlane.xlu0 %787
    %v789 = vsel %vm28, %v784, 0.0
    %790 = vadd.xlane.f32.xlu0 %v789
    %v791 = vpop.xlane.xlu0 %790
    %v792 = vrcp.pop 16.0
    %v793 = vmul.f32 16.0, %v792
    %v794 = vsub.f32 1.0, %v793
    %v795 = vmul.f32 %v792, %v794
    %v796 = vadd.f32 %v792, %v795
    %vm797 = vweird.f32 %v792
    %v798 = vsel %vm797, %v792, %v796
    %v799 = vmul.f32 %v788, %v798
    %v800 = vmul.f32 %v791, %v798
    %v801 = vsub.f32 %v783, %v799
    %v802 = vsub.f32 %v784, %v800
    %v803 = vmul.f32 %v801, %v801
    %v804 = vmul.f32 %v802, %v802
    %v805 = vsel %vm785, %v803, 0.0
    %806 = vadd.xlane.f32.xlu0 %v805
    %v807 = vpop.xlane.xlu0 %806
    %v808 = vsel %vm28, %v804, 0.0
    %809 = vadd.xlane.f32.xlu0 %v808
    %v810 = vpop.xlane.xlu0 %809
    %v811 = vmul.f32 %v807, %v798
    %v812 = vmul.f32 %v810, %v798
    %v813 = vadd.f32 %v811, 1e-05
    %v814 = vadd.f32 %v812, 1e-05
    %v815 = vrsqrt.pop %v813
    %v816 = vmul.f32 %v815, %v813
    %v817 = vmul.f32 %v816, %v815
    %v818 = vmul.f32 0.5, %v817
    %v819 = vsub.f32 1.5, %v818
    %v820 = vmul.f32 %v815, %v819
    %vm821 = vweird.f32 %v813
    %vm822 = vweird.f32 %v815
    %vm823 = vmor %vm821, %vm822
    %v824 = vsel %vm823, %v815, %v820
    %v825 = vrsqrt.pop %v814
    %v826 = vmul.f32 %v825, %v814
    %v827 = vmul.f32 %v826, %v825
    %v828 = vmul.f32 0.5, %v827
    %v829 = vsub.f32 1.5, %v828
    %v830 = vmul.f32 %v825, %v829
    %vm831 = vweird.f32 %v814
    %vm832 = vweird.f32 %v825
    %vm833 = vmor %vm831, %vm832
    %v834 = vsel %vm833, %v825, %v830
    %v835 = vmul.f32 %v801, %v824
    %v836 = vmul.f32 %v802, %v834
    %v837 = vperm.slane %v681, 1
    %v838 = vmul.f32 %v835, %v837
    %v839 = vmul.f32 %v836, %v837
    %v840 = vperm.slane %v681, 2
    %v841 = vadd.f32 %v838, %v840
    %v842 = vadd.f32 %v839, %v840
    %vm843 = vcmask 125952
    %844 = vst.msk [vmem:[#allocation6 + $0x1] sm:$0xf] %vm843, %v841
    %vm845 = vcmask 130053
    %846 = vst.msk [vmem:[#allocation6 + $0x2] sm:$0xe0] %vm845, %v841
    %847 = vst.msk [vmem:[#allocation6 + $0xa] sm:$0x1] %vm28, %v842
    %v848 = vld [vmem:[%s1 + $0x70] sm:$0xff]
    %v849 = vld [vmem:[%s1 + $0x78] sm:$0xff]
    %v850 = vld [vmem:[%s1 + $0x80] sm:$0xff]
    %v851 = vld [vmem:[%s1 + $0x88] sm:$0xff]
    %v852 = vld [vmem:[%s1 + $0x90] sm:$0xff]
    %v853 = vld [vmem:[%s1 + $0x98] sm:$0xff]
    %v854 = vld [vmem:[%s1 + $0xa0] sm:$0x7]
    %v855 = vld [vmem:[#allocation6] sm:$0xff]
    %v856 = vld [vmem:[#allocation6 + $0x8] sm:$0x3]
    %v857 = vld [vmem:[#allocation6 + $0x1] sm:$0xff]
    %v858 = vld [vmem:[#allocation6 + $0x9] sm:$0x3]
    %v859 = vld [vmem:[#allocation6 + $0x2] sm:$0xff]
    %v860 = vld [vmem:[#allocation6 + $0xa] sm:$0x3]
    %v862 = vsel %vm785, %v857, 0
    %v865 = vsel %vm785, %v858, 0
    %867 = vmatpush.msra.mxu0 0.0
    %868 = vmatpush.msra.mxu0 0.0
    %869 = vmatpush.msra.mxu0 0.0
    %870 = vmatpush.msra.mxu0 0.0
    %871 = vmatpush.msra.mxu0 0.0
    %872 = vmatpush.msra.mxu0 0.0
    %873 = vmatpush.msra.mxu0 0.0
    %874 = vmatpush.msra.mxu0 0.0
    %875 = vmatpush.msra.mxu0 0.0
    %876 = vmatpush.msra.mxu0 0.0
    %877 = vmatpush.msra.mxu0 0.0
    %878 = vmatpush.msra.mxu0 0.0
    %879 = vmatpush.msra.mxu0 0.0
    %880 = vmatpush.msra.mxu0 0.0
    %881 = vmatpush.msra.mxu0 %v851
    %882 = vmatpush.msra.mxu0 %v850
    %883 = vmatmul.f32.gmra.mxu0 %v862
    %v884 = vpop.f32.mrf.mxu0
    %v885 = vadd.f32 0.0, %v884
    %886 = vmatmul.f32.gmra.mxu0 %v865
    %v887 = vpop.f32.mrf.mxu0
    %v888 = vadd.f32 0.0, %v887
    %889 = vdwg.mxu0
    %v891 = vsel %vm785, %v859, 0
    %v894 = vsel %vm785, %v860, 0
    %896 = vmatpush.msra.mxu0 0.0
    %897 = vmatpush.msra.mxu0 0.0
    %898 = vmatpush.msra.mxu0 0.0
    %899 = vmatpush.msra.mxu0 0.0
    %900 = vmatpush.msra.mxu0 0.0
    %901 = vmatpush.msra.mxu0 0.0
    %902 = vmatpush.msra.mxu0 0.0
    %903 = vmatpush.msra.mxu0 0.0
    %904 = vmatpush.msra.mxu0 0.0
    %905 = vmatpush.msra.mxu0 0.0
    %906 = vmatpush.msra.mxu0 0.0
    %907 = vmatpush.msra.mxu0 0.0
    %908 = vmatpush.msra.mxu0 0.0
    %909 = vmatpush.msra.mxu0 0.0
    %910 = vmatpush.msra.mxu0 %v853
    %911 = vmatpush.msra.mxu0 %v852
    %912 = vmatmul.f32.gmra.mxu0 %v891
    %v913 = vpop.f32.mrf.mxu0
    %v914 = vadd.f32 0.0, %v913
    %915 = vmatmul.f32.gmra.mxu0 %v894
    %v916 = vpop.f32.mrf.mxu0
    %v917 = vadd.f32 0.0, %v916
    %918 = vdwg.mxu0
    %v920 = vsel %vm785, %v855, 0
    %v923 = vsel %vm785, %v856, 0
    %925 = vmatpush.msra.mxu0 0.0
    %926 = vmatpush.msra.mxu0 0.0
    %927 = vmatpush.msra.mxu0 0.0
    %928 = vmatpush.msra.mxu0 0.0
    %929 = vmatpush.msra.mxu0 0.0
    %930 = vmatpush.msra.mxu0 0.0
    %931 = vmatpush.msra.mxu0 0.0
    %932 = vmatpush.msra.mxu0 0.0
    %933 = vmatpush.msra.mxu0 0.0
    %934 = vmatpush.msra.mxu0 0.0
    %935 = vmatpush.msra.mxu0 0.0
    %936 = vmatpush.msra.mxu0 0.0
    %937 = vmatpush.msra.mxu0 0.0
    %938 = vmatpush.msra.mxu0 0.0
    %939 = vmatpush.msra.mxu0 %v849
    %940 = vmatpush.msra.mxu0 %v848
    %941 = vmatmul.f32.gmra.mxu0 %v920
    %v942 = vpop.f32.mrf.mxu0
    %v943 = vadd.f32 %v885, %v942
    %944 = vmatmul.f32.gmra.mxu0 %v923
    %v945 = vpop.f32.mrf.mxu0
    %v946 = vadd.f32 %v888, %v945
    %947 = vdwg.mxu0
    %v948 = vadd.f32 %v943, %v914
    %v949 = vadd.f32 %v946, %v917
    %v950 = vperm.slane %v854, 0
    %v951 = vadd.f32 %v948, %v950
    %v952 = vadd.f32 %v949, %v950
    %v953 = vsel %vm785, %v951, 0.0
    %954 = vadd.xlane.f32.xlu0 %v953
    %v955 = vpop.xlane.xlu0 %954
    %v956 = vsel %vm30, %v952, 0.0
    %957 = vadd.xlane.f32.xlu0 %v956
    %v958 = vpop.xlane.xlu0 %957
    %v959 = vmul.f32 %v955, %v798
    %v960 = vmul.f32 %v958, %v798
    %v961 = vsub.f32 %v951, %v959
    %v962 = vsub.f32 %v952, %v960
    %v963 = vmul.f32 %v961, %v961
    %v964 = vmul.f32 %v962, %v962
    %v965 = vsel %vm785, %v963, 0.0
    %966 = vadd.xlane.f32.xlu0 %v965
    %v967 = vpop.xlane.xlu0 %966
    %v968 = vsel %vm30, %v964, 0.0
    %969 = vadd.xlane.f32.xlu0 %v968
    %v970 = vpop.xlane.xlu0 %969
    %v971 = vmul.f32 %v967, %v798
    %v972 = vmul.f32 %v970, %v798
    %v973 = vadd.f32 %v971, 1e-05
    %v974 = vadd.f32 %v972, 1e-05
    %v975 = vrsqrt.pop %v973
    %v976 = vmul.f32 %v975, %v973
    %v977 = vmul.f32 %v976, %v975
    %v978 = vmul.f32 0.5, %v977
    %v979 = vsub.f32 1.5, %v978
    %v980 = vmul.f32 %v975, %v979
    %vm981 = vweird.f32 %v973
    %vm982 = vweird.f32 %v975
    %vm983 = vmor %vm981, %vm982
    %v984 = vsel %vm983, %v975, %v980
    %v985 = vrsqrt.pop %v974
    %v986 = vmul.f32 %v985, %v974
    %v987 = vmul.f32 %v986, %v985
    %v988 = vmul.f32 0.5, %v987
    %v989 = vsub.f32 1.5, %v988
    %v990 = vmul.f32 %v985, %v989
    %vm991 = vweird.f32 %v974
    %vm992 = vweird.f32 %v985
    %vm993 = vmor %vm991, %vm992
    %v994 = vsel %vm993, %v985, %v990
    %v995 = vmul.f32 %v961, %v984
    %v996 = vmul.f32 %v962, %v994
    %v997 = vperm.slane %v854, 1
    %v998 = vmul.f32 %v995, %v997
    %v999 = vmul.f32 %v996, %v997
    %v1000 = vperm.slane %v854, 2
    %v1001 = vadd.f32 %v998, %v1000
    %v1002 = vadd.f32 %v999, %v1000
    %v1003 = vsel %vm843, %v1001, -inf
    %v1004 = vrot.slane %v1003, 4
    %v1005 = vmax.f32 %v1003, %v1004
    %v1006 = vrot.slane %v1005, 2
    %v1007 = vmax.f32 %v1005, %v1006
    %v1008 = vrot.slane %v1007, 1
    %v1009 = vmax.f32 %v1007, %v1008
    %vm1010 = vcmask 130054
    %v1011 = vsel %vm1010, %v1001, -inf
    %v1012 = vsel %vm30, %v1002, -inf
    %v1013 = vmax.f32 %v1011, %v1012
    %v1014 = vrot.slane %v1013, 4
    %v1015 = vmax.f32 %v1013, %v1014
    %v1016 = vrot.slane %v1015, 2
    %v1017 = vmax.f32 %v1015, %v1016
    %v1018 = vrot.slane %v1017, 1
    %v1019 = vmax.f32 %v1017, %v1018
    %vm1020 = vcmask 1040384
    %v1021 = vsel %vm1020, %v1009, %v1019
    %1022 = vst.msk [vmem:[#allocation7] sm:$0x3] %vm30, %v1021
    // Predicated region
    $region10: #{tpu_custom_call.1} parent=1 // pred_check
      _
    $region11: #{tpu_custom_call.1} parent=1 // pred_check_branch
      %1024 = sbr.rel (0) target = $region13
    $region12: #{tpu_custom_call.1} parent=1 // pred_region
      %1026 = vsyncadd [#allocation8], 0
      %s1028 = sshll.u32 [#allocation7], 4
      %s1029 = int_to_ptr.vmem [resolvable:$true] %s1028
      %s1030 = sshll.u32 %s2, 4
      %s1031 = int_to_ptr.hbm [resolvable:$true] %s1030
      %1033 = dma.vmem_to_hbm [thread:$0]  %s1029, 32, %s1031, [#allocation8]
    $region13: #{tpu_custom_call.1} parent=1 // pred_fallthru
      _
    // Predicated region
    $region14: #{tpu_custom_call.1} parent=1 // pred_check
      _
    $region15: #{tpu_custom_call.1} parent=1 // pred_check_branch
      %1035 = sbr.rel (0) target = $region17
    $region16: #{tpu_custom_call.1} parent=1 // pred_region
      %1037 = dma.done [#allocation8], 32
    $region17: #{tpu_custom_call.1} parent=1 // pred_fallthru
      _
    %1038 = vsyncpa [#allocation8], 1

</llo_original>
